<compile_context>
chip_gen: v6e
topology: v6e:2x2x1
jax: 0.10.0
libtpu: 0.0.40
codegen_flags: <defaults>
</compile_context>

<pallas_src>
import jax
import jax.numpy as jnp
from jax.experimental import pallas as pl
from jax.experimental.pallas import tpu as pltpu

EMBED_DIM = 512       # d_out of the Projection head
CONVNEXT_DIM = 1024   # convnextv2_base head.fc.in_features
LN_EPS = 1e-5         # nn.LayerNorm default eps


# --------------------------------------------------------------------------
# Fused kernel: Projection (linear1 -> gelu -> linear2 -> +residual ->
# LayerNorm) followed by L2 normalization (projected / torch.norm(projected)).
# One grid step processes TILE_B rows; weights stay resident across steps.
# --------------------------------------------------------------------------
def _projection_normalize_kernel(x_ref, w1_ref, w2_ref, g_ref, b_ref, o_ref):
    x = x_ref[...]        # bf16 [TILE_B, d_in]
    w1 = w1_ref[...]      # bf16 [d_in, d_out]
    w2 = w2_ref[...]      # bf16 [d_out, d_out]

    # linear1: bf16 MXU inputs, f32 accumulation.
    embed1 = jnp.dot(x, w1, preferred_element_type=jnp.float32)
    # TODO(synk): PyTorch F.gelu defaults to the exact erf form; the tanh
    # approximation is used here for guaranteed Mosaic lowering (EUP tanh).
    h = jax.nn.gelu(embed1, approximate=True)
    # linear2 (dropout p=0.5 is identity in eval mode).
    # TODO(synk): training-mode dropout masking is not implemented.
    embed2 = jnp.dot(h.astype(jnp.bfloat16), w2,
                     preferred_element_type=jnp.float32)
    s = embed1 + embed2

    # LayerNorm over the last dim.
    mean = jnp.mean(s, axis=-1, keepdims=True)
    cent = s - mean
    var = jnp.mean(cent * cent, axis=-1, keepdims=True)
    ln = cent * jax.lax.rsqrt(var + LN_EPS)
    ln = ln * g_ref[...] + b_ref[...]

    # projected_vec / torch.norm(projected_vec, dim=-1, keepdim=True)
    # (single rsqrt on the EUP instead of sqrt + divide; no eps clamp,
    #  faithful to torch.norm — an all-zero row would be non-finite there too)
    inv_norm = jax.lax.rsqrt(jnp.sum(ln * ln, axis=-1, keepdims=True))
    o_ref[...] = (ln * inv_norm).astype(o_ref.dtype)


def _pick_tile_b(b):
    # Largest batch tile that keeps (TILE_B, K) blocks sublane-aligned and
    # divides B exactly; falls back to a full-array block for odd small B.
    for t in (512, 256, 128, 64, 32, 16, 8):
        if b % t == 0:
            return t
    return b


def vision_encode(features_bf16, w1, w2, gamma, beta):
    """features_bf16: [B, d_in] bf16. Returns L2-normalized [B, d_out] f32."""
    B, d_in = features_bf16.shape
    d_out = w1.shape[1]
    tile_b = _pick_tile_b(B)
    grid = (B // tile_b,)

    return pl.pallas_call(
        _projection_normalize_kernel,
        out_shape=jax.ShapeDtypeStruct((B, d_out), jnp.float32),
        grid_spec=pltpu.PrefetchScalarGridSpec(
            num_scalar_prefetch=0,
            grid=grid,
            in_specs=[
                # batch-tiled activations (double-buffered by the pipeline)
                pl.BlockSpec((tile_b, d_in), lambda i: (i, 0)),
                # resident weights / LN params (same block every step)
                pl.BlockSpec((d_in, d_out), lambda i: (0, 0)),
                pl.BlockSpec((d_out, d_out), lambda i: (0, 0)),
                pl.BlockSpec((1, d_out), lambda i: (0, 0)),
                pl.BlockSpec((1, d_out), lambda i: (0, 0)),
            ],
            out_specs=pl.BlockSpec((tile_b, d_out), lambda i: (i, 0)),
        ),
        compiler_params=pltpu.CompilerParams(
            # batch axis is independent -> shard across v7x's 2 TensorCores
            dimension_semantics=("parallel",),
            # explicit VMEM budget: safe on v7x (64 MiB phys) as well as
            # v5e/v6e; per-step footprint here is well under 4 MiB.
            vmem_limit_bytes=32 * 1024 * 1024,
        ),
    )(features_bf16, w1, w2, gamma, beta)


# --------------------------------------------------------------------------
# Full forward: frozen-backbone stub in plain JAX, projection head in Pallas.
# --------------------------------------------------------------------------
def vision_encoder_forward(images, params):
    # TODO(synk): timm `convnextv2_base` pretrained/frozen backbone has no
    # clean Pallas equivalent; replaced with a deterministic pooled-linear
    # stub producing 1024-d features (same shape contract as self.base(x)).
    feats = jnp.mean(images, axis=(2, 3)) @ params["w_stub"]        # [B, 1024]
    feats = feats.astype(jnp.bfloat16)                              # bf16 MXU feed
    return vision_encode(feats, params["w1"], params["w2"],
                         params["gamma"], params["beta"])


if __name__ == "__main__":
    B = 8                       # multiple of 8 keeps blocks sublane-aligned
    key = jax.random.PRNGKey(0)
    ks = jax.random.split(key, 5)

    # PyTorch-style NCHW image input (small spatial size for the example).
    images = jax.random.normal(ks[0], (B, 3, 32, 32), jnp.float32)

    params = {
        # frozen-backbone stub weight (plain JAX, not part of the kernel)
        "w_stub": jax.random.normal(ks[1], (3, CONVNEXT_DIM), jnp.float32) * 0.1,
        # Projection(1024 -> 512): linear1/linear2 (no bias) stored as bf16
        # so the MXU sees native bf16 inputs; LayerNorm affine stays f32.
        "w1": (jax.random.normal(ks[2], (CONVNEXT_DIM, EMBED_DIM), jnp.float32)
               * 0.02).astype(jnp.bfloat16),
        "w2": (jax.random.normal(ks[3], (EMBED_DIM, EMBED_DIM), jnp.float32)
               * 0.02).astype(jnp.bfloat16),
        "gamma": jnp.ones((1, EMBED_DIM), jnp.float32),
        "beta": jnp.zeros((1, EMBED_DIM), jnp.float32),
    }

    out = vision_encoder_forward(images, params)
    jax.block_until_ready(out)
    assert out.shape == (B, EMBED_DIM)
    print("KERNEL_OK")
</pallas_src>

<mosaic_0001>
module attributes {stable_mosaic.version = 11 : i64} {
  func.func @_projection_normalize_kernel(%arg0: i32, %arg1: memref<8x1024xbf16, #tpu.memory_space<vmem>>, %arg2: memref<1024x512xbf16, #tpu.memory_space<vmem>>, %arg3: memref<512x512xbf16, #tpu.memory_space<vmem>>, %arg4: memref<1x512xf32, #tpu.memory_space<vmem>>, %arg5: memref<1x512xf32, #tpu.memory_space<vmem>>, %arg6: memref<8x512xf32, #tpu.memory_space<vmem>>) attributes {dimension_semantics = [#tpu.dimension_semantics<parallel>], iteration_bounds = array<i64: 1>, scalar_prefetch = 0 : i64, scratch_operands = 0 : i64, tpu.core_type = #tpu.core_type<tc>, window_params = [{transform_indices = @transform_0, window_bounds = array<i64: 8, 1024>}, {pipeline_mode = #tpu.pipeline_mode<synchronous>, transform_indices = @transform_1, window_bounds = array<i64: 1024, 512>}, {pipeline_mode = #tpu.pipeline_mode<synchronous>, transform_indices = @transform_2, window_bounds = array<i64: 512, 512>}, {pipeline_mode = #tpu.pipeline_mode<synchronous>, transform_indices = @transform_3, window_bounds = array<i64: 1, 512>}, {pipeline_mode = #tpu.pipeline_mode<synchronous>, transform_indices = @transform_4, window_bounds = array<i64: 1, 512>}, {transform_indices = @transform_5, window_bounds = array<i64: 8, 512>}]} {
    %c0 = arith.constant 0 : index
    %c0_0 = arith.constant 0 : index
    %0 = vector.load %arg1[%c0, %c0_0] : memref<8x1024xbf16, #tpu.memory_space<vmem>>, vector<8x1024xbf16>
    %c0_1 = arith.constant 0 : index
    %c0_2 = arith.constant 0 : index
    %1 = vector.load %arg2[%c0_1, %c0_2] : memref<1024x512xbf16, #tpu.memory_space<vmem>>, vector<1024x512xbf16>
    %c0_3 = arith.constant 0 : index
    %c0_4 = arith.constant 0 : index
    %2 = vector.load %arg3[%c0_3, %c0_4] : memref<512x512xbf16, #tpu.memory_space<vmem>>, vector<512x512xbf16>
    %cst = arith.constant dense<0.000000e+00> : vector<8x512xf32>
    %3 = tpu.matmul %0, %1, %cst {dimension_numbers = #tpu.dot_dimension_numbers<[1], [0], [0], [1], [0, 0, 1, 1], [], []>} : vector<8x1024xbf16>, vector<1024x512xbf16>, vector<8x512xf32> -> vector<8x512xf32>
    %4 = arith.mulf %3, %3 : vector<8x512xf32>
    %5 = arith.mulf %3, %4 : vector<8x512xf32>
    %cst_5 = arith.constant 4.471500e-02 : f32
    %6 = vector.broadcast %cst_5 : f32 to vector<8x512xf32>
    %7 = arith.mulf %6, %5 : vector<8x512xf32>
    %8 = arith.addf %3, %7 : vector<8x512xf32>
    %cst_6 = arith.constant 0.797884583 : f32
    %9 = vector.broadcast %cst_6 : f32 to vector<8x512xf32>
    %10 = arith.mulf %9, %8 : vector<8x512xf32>
    %11 = math.tanh %10 : vector<8x512xf32>
    %cst_7 = arith.constant 1.000000e+00 : f32
    %12 = vector.broadcast %cst_7 : f32 to vector<8x512xf32>
    %13 = arith.addf %12, %11 : vector<8x512xf32>
    %cst_8 = arith.constant 5.000000e-01 : f32
    %14 = vector.broadcast %cst_8 : f32 to vector<8x512xf32>
    %15 = arith.mulf %14, %13 : vector<8x512xf32>
    %16 = arith.mulf %3, %15 : vector<8x512xf32>
    %17 = arith.truncf %16 : vector<8x512xf32> to vector<8x512xbf16>
    %cst_9 = arith.constant dense<0.000000e+00> : vector<8x512xf32>
    %18 = tpu.matmul %17, %2, %cst_9 {dimension_numbers = #tpu.dot_dimension_numbers<[1], [0], [0], [1], [0, 0, 1, 1], [], []>} : vector<8x512xbf16>, vector<512x512xbf16>, vector<8x512xf32> -> vector<8x512xf32>
    %19 = arith.addf %3, %18 : vector<8x512xf32>
    %cst_10 = arith.constant dense<0.000000e+00> : vector<8xf32>
    %20 = vector.multi_reduction <add>, %19, %cst_10 [1] : vector<8x512xf32> to vector<8xf32>
    %21 = vector.shape_cast %20 : vector<8xf32> to vector<8x1xf32>
    %cst_11 = arith.constant 5.120000e+02 : f32
    %22 = vector.broadcast %cst_11 : f32 to vector<8x1xf32>
    %23 = arith.divf %21, %22 : vector<8x1xf32>
    %24 = vector.broadcast %23 : vector<8x1xf32> to vector<8x512xf32>
    %25 = arith.subf %19, %24 : vector<8x512xf32>
    %26 = arith.mulf %25, %25 : vector<8x512xf32>
    %cst_12 = arith.constant dense<0.000000e+00> : vector<8xf32>
    %27 = vector.multi_reduction <add>, %26, %cst_12 [1] : vector<8x512xf32> to vector<8xf32>
    %28 = vector.shape_cast %27 : vector<8xf32> to vector<8x1xf32>
    %cst_13 = arith.constant 5.120000e+02 : f32
    %29 = vector.broadcast %cst_13 : f32 to vector<8x1xf32>
    %30 = arith.divf %28, %29 : vector<8x1xf32>
    %cst_14 = arith.constant 9.99999974E-6 : f32
    %31 = vector.broadcast %cst_14 : f32 to vector<8x1xf32>
    %32 = arith.addf %30, %31 : vector<8x1xf32>
    %33 = math.rsqrt %32 : vector<8x1xf32>
    %34 = vector.broadcast %33 : vector<8x1xf32> to vector<8x512xf32>
    %35 = arith.mulf %25, %34 : vector<8x512xf32>
    %c0_15 = arith.constant 0 : index
    %c0_16 = arith.constant 0 : index
    %36 = vector.load %arg4[%c0_15, %c0_16] : memref<1x512xf32, #tpu.memory_space<vmem>>, vector<1x512xf32>
    %37 = vector.broadcast %36 : vector<1x512xf32> to vector<8x512xf32>
    %38 = arith.mulf %35, %37 : vector<8x512xf32>
    %c0_17 = arith.constant 0 : index
    %c0_18 = arith.constant 0 : index
    %39 = vector.load %arg5[%c0_17, %c0_18] : memref<1x512xf32, #tpu.memory_space<vmem>>, vector<1x512xf32>
    %40 = vector.broadcast %39 : vector<1x512xf32> to vector<8x512xf32>
    %41 = arith.addf %38, %40 : vector<8x512xf32>
    %42 = arith.mulf %41, %41 : vector<8x512xf32>
    %cst_19 = arith.constant dense<0.000000e+00> : vector<8xf32>
    %43 = vector.multi_reduction <add>, %42, %cst_19 [1] : vector<8x512xf32> to vector<8xf32>
    %44 = vector.shape_cast %43 : vector<8xf32> to vector<8x1xf32>
    %45 = math.rsqrt %44 : vector<8x1xf32>
    %46 = vector.broadcast %45 : vector<8x1xf32> to vector<8x512xf32>
    %47 = arith.mulf %41, %46 : vector<8x512xf32>
    %c0_20 = arith.constant 0 : index
    %c0_21 = arith.constant 0 : index
    %48 = vector.load %arg6[%c0_20, %c0_21] : memref<8x512xf32, #tpu.memory_space<vmem>>, vector<8x512xf32>
    tpu.vector_store %arg6[%c0_20, %c0_21], %47 {strides = array<i32>} : memref<8x512xf32, #tpu.memory_space<vmem>>, vector<8x512xf32>,
    return
  }
  func.func @transform_0(%arg0: i32) -> (i32, i32) {
    %c0_i32 = arith.constant 0 : i32
    %c0_i32_0 = arith.constant 0 : i32
    return %arg0, %c0_i32 : i32, i32
  }
  func.func @transform_1(%arg0: i32) -> (i32, i32) {
    %c0_i32 = arith.constant 0 : i32
    %c0_i32_0 = arith.constant 0 : i32
    %c0_i32_1 = arith.constant 0 : i32
    return %c0_i32, %c0_i32_0 : i32, i32
  }
  func.func @transform_2(%arg0: i32) -> (i32, i32) {
    %c0_i32 = arith.constant 0 : i32
    %c0_i32_0 = arith.constant 0 : i32
    %c0_i32_1 = arith.constant 0 : i32
    return %c0_i32, %c0_i32_0 : i32, i32
  }
  func.func @transform_3(%arg0: i32) -> (i32, i32) {
    %c0_i32 = arith.constant 0 : i32
    %c0_i32_0 = arith.constant 0 : i32
    %c0_i32_1 = arith.constant 0 : i32
    return %c0_i32, %c0_i32_0 : i32, i32
  }
  func.func @transform_4(%arg0: i32) -> (i32, i32) {
    %c0_i32 = arith.constant 0 : i32
    %c0_i32_0 = arith.constant 0 : i32
    %c0_i32_1 = arith.constant 0 : i32
    return %c0_i32, %c0_i32_0 : i32, i32
  }
  func.func @transform_5(%arg0: i32) -> (i32, i32) {
    %c0_i32 = arith.constant 0 : i32
    %c0_i32_0 = arith.constant 0 : i32
    return %arg0, %c0_i32 : i32, i32
  }
}

</mosaic_0001>

<llo_original>
// kernel: tpu_custom_call.1
$region0: #{tpu_custom_call.1}
  #allocation0 [shape = 'u32[]', space=smem, size = 0x4, offset = 0x4, fixed_abs, tag = 'smem constant byte address 0x4 - core index']
  #allocation1 [shape = 'u32[144,128]{1,0:T(1,128)}', space=vmem, size = 0x12000, scoped, tag = 'internal scratch']
  %s0 = inlined_call_operand.hbm [shape: bf16[8,1024], index: 0, kind: input, shape index: {}]
  %s1 = inlined_call_operand.hbm [shape: bf16[1024,512], index: 1, kind: input, shape index: {}]
  %s2 = inlined_call_operand.hbm [shape: bf16[512,512], index: 2, kind: input, shape index: {}]
  %s3 = inlined_call_operand.vmem [shape: f32[1,512], index: 3, kind: input, shape index: {}]
  %s4 = inlined_call_operand.hbm [shape: f32[1,512], index: 4, kind: input, shape index: {}]
  %s5 = inlined_call_operand.hbm [shape: f32[8,512], index: 5, kind: output, shape index: {}]
  %s6 = sld [smem:[#allocation0]]
  $region46: #{tpu_custom_call.1} parent=0
    _
  %s8 = ssub.s32 1, %s6
  %s9 = scalar_select 0, %s8, %s6
  $region1: #{tpu_custom_call.1} parent=0
    #allocation2 [shape = 'u8[16384]{0}', space=vmem, size = 0x4000, scoped, tag = 'input window, operand 0, single buffered']
    #allocation3 [shape = 's32[1]{0}', space=sflag, size = 0x4, scoped, tag = 'scoped memory for tpu_custom_call.1']
    #allocation4 [shape = 's32[1]{0}', space=sflag, size = 0x4, scoped, tag = 'scoped memory for tpu_custom_call.1']
    #allocation5 [shape = 'u8[1048576]{0}', space=vmem, size = 0x100000, scoped, tag = 'input window, operand 1, single buffered']
    #allocation6 [shape = 's32[1]{0}', space=sflag, size = 0x4, scoped, tag = 'scoped memory for tpu_custom_call.1']
    #allocation7 [shape = 'u8[524288]{0}', space=vmem, size = 0x80000, scoped, tag = 'input window, operand 2, single buffered']
    #allocation8 [shape = 'u8[2048]{0}', space=vmem, size = 0x800, scoped, tag = 'input window, operand 4, single buffered']
    #allocation9 [shape = 's32[1]{0}', space=sflag, size = 0x4, scoped, tag = 'scoped memory for tpu_custom_call.1']
    #allocation10 [shape = 'u8[16384]{0}', space=vmem, size = 0x4000, scoped, tag = 'output window, operand 0, single buffered']
    %10 = vsyncpa [#allocation3], 0
    %11 = vsyncpa [#allocation6], 0
    %12 = vsyncpa [#allocation9], 0
    %13 = vsyncpa [#allocation4], 0
    // Predicated region
    $region2: #{tpu_custom_call.1} parent=1 // pred_check
      _
    $region3: #{tpu_custom_call.1} parent=1 // pred_check_branch
      %15 = sbr.rel (0) target = $region5
    $region4: #{tpu_custom_call.1} parent=1 // pred_region
      %s17 = ssub.s32 512, 512
      %18 = vsyncadd [#allocation3], %s17
      %s20 = sshll.u32 [#allocation2], 4
      %s21 = int_to_ptr.vmem [resolvable:$true] %s20
      %23 = dma.hbm_to_vmem [thread:$0]  %s0, 512, %s21, [#allocation3]
    $region5: #{tpu_custom_call.1} parent=1 // pred_fallthru
      _
    // Predicated region
    $region6: #{tpu_custom_call.1} parent=1 // pred_check
      _
    $region7: #{tpu_custom_call.1} parent=1 // pred_check_branch
      %25 = sbr.rel (0) target = $region9
    $region8: #{tpu_custom_call.1} parent=1 // pred_region
      %s27 = ssub.s32 32768, 32768
      %28 = vsyncadd [#allocation6], %s27
      %s29 = sshll.u32 [#allocation5], 4
      %s30 = int_to_ptr.vmem [resolvable:$true] %s29
      %35 = dma.hbm_to_vmem [thread:$0]  %s1, 32768, %s30, [#allocation6], 256, 256, 16
    $region9: #{tpu_custom_call.1} parent=1 // pred_fallthru
      _
    // Predicated region
    $region10: #{tpu_custom_call.1} parent=1 // pred_check
      _
    $region11: #{tpu_custom_call.1} parent=1 // pred_check_branch
      %37 = sbr.rel (0) target = $region13
    $region12: #{tpu_custom_call.1} parent=1 // pred_region
      %s39 = ssub.s32 16384, 16384
      %40 = vsyncadd [#allocation6], %s39
      %s41 = sshll.u32 [#allocation7], 4
      %s42 = int_to_ptr.vmem [resolvable:$true] %s41
      %47 = dma.hbm_to_vmem [thread:$0]  %s2, 16384, %s42, [#allocation6], 256, 256, 16
    $region13: #{tpu_custom_call.1} parent=1 // pred_fallthru
      _
    // Predicated region
    $region14: #{tpu_custom_call.1} parent=1 // pred_check
      _
    $region15: #{tpu_custom_call.1} parent=1 // pred_check_branch
      %49 = sbr.rel (0) target = $region17
    $region16: #{tpu_custom_call.1} parent=1 // pred_region
      _
    $region17: #{tpu_custom_call.1} parent=1 // pred_fallthru
      _
    // Predicated region
    $region18: #{tpu_custom_call.1} parent=1 // pred_check
      _
    $region19: #{tpu_custom_call.1} parent=1 // pred_check_branch
      %51 = sbr.rel (0) target = $region21
    $region20: #{tpu_custom_call.1} parent=1 // pred_region
      %s53 = ssub.s32 64, 64
      %54 = vsyncadd [#allocation9], %s53
      %s56 = sshll.u32 [#allocation8], 4
      %s57 = int_to_ptr.vmem [resolvable:$true] %s56
      %59 = dma.hbm_to_vmem [thread:$0]  %s4, 64, %s57, [#allocation9]
    $region21: #{tpu_custom_call.1} parent=1 // pred_fallthru
      _
    // Predicated region
    $region22: #{tpu_custom_call.1} parent=1 // pred_check
      _
    $region23: #{tpu_custom_call.1} parent=1 // pred_check_branch
      %61 = sbr.rel (0) target = $region25
    $region24: #{tpu_custom_call.1} parent=1 // pred_region
      %62 = dma.done [#allocation3], 512
    $region25: #{tpu_custom_call.1} parent=1 // pred_fallthru
      _
    // Predicated region
    $region26: #{tpu_custom_call.1} parent=1 // pred_check
      _
    $region27: #{tpu_custom_call.1} parent=1 // pred_check_branch
      %64 = sbr.rel (0) target = $region29
    $region28: #{tpu_custom_call.1} parent=1 // pred_region
      %65 = dma.done [#allocation6], 32768
    $region29: #{tpu_custom_call.1} parent=1 // pred_fallthru
      _
    // Predicated region
    $region30: #{tpu_custom_call.1} parent=1 // pred_check
      _
    $region31: #{tpu_custom_call.1} parent=1 // pred_check_branch
      %67 = sbr.rel (0) target = $region33
    $region32: #{tpu_custom_call.1} parent=1 // pred_region
      %68 = dma.done [#allocation6], 16384
    $region33: #{tpu_custom_call.1} parent=1 // pred_fallthru
      _
    // Predicated region
    $region34: #{tpu_custom_call.1} parent=1 // pred_check
      _
    $region35: #{tpu_custom_call.1} parent=1 // pred_check_branch
      %70 = sbr.rel (0) target = $region37
    $region36: #{tpu_custom_call.1} parent=1 // pred_region
      %71 = dma.done [#allocation9], 64
    $region37: #{tpu_custom_call.1} parent=1 // pred_fallthru
      _
    %v72 = vld [vmem:[#allocation2] sm:$0xff]
    %v73 = vld [vmem:[#allocation2 + $0x8] sm:$0xff]
    %v74 = vld [vmem:[#allocation2 + $0x10] sm:$0xff]
    %v75 = vld [vmem:[#allocation2 + $0x18] sm:$0xff]
    %v76 = vld [vmem:[#allocation5] sm:$0xff]
    %v77 = vld [vmem:[#allocation5 + $0x8] sm:$0xff]
    %v78 = vld [vmem:[#allocation5 + $0x10] sm:$0xff]
    %v79 = vld [vmem:[#allocation5 + $0x18] sm:$0xff]
    %v80 = vld [vmem:[#allocation5 + $0x20] sm:$0xff]
    %v81 = vld [vmem:[#allocation5 + $0x28] sm:$0xff]
    %v82 = vld [vmem:[#allocation5 + $0x30] sm:$0xff]
    %v83 = vld [vmem:[#allocation5 + $0x38] sm:$0xff]
    %v84 = vld [vmem:[#allocation5 + $0x40] sm:$0xff]
    %v85 = vld [vmem:[#allocation5 + $0x48] sm:$0xff]
    %v86 = vld [vmem:[#allocation5 + $0x50] sm:$0xff]
    %v87 = vld [vmem:[#allocation5 + $0x58] sm:$0xff]
    %v88 = vld [vmem:[#allocation5 + $0x60] sm:$0xff]
    %v89 = vld [vmem:[#allocation5 + $0x68] sm:$0xff]
    %v90 = vld [vmem:[#allocation5 + $0x70] sm:$0xff]
    %v91 = vld [vmem:[#allocation5 + $0x78] sm:$0xff]
    %v92 = vld [vmem:[#allocation5 + $0x80] sm:$0xff]
    %v93 = vld [vmem:[#allocation5 + $0x88] sm:$0xff]
    %v94 = vld [vmem:[#allocation5 + $0x90] sm:$0xff]
    %v95 = vld [vmem:[#allocation5 + $0x98] sm:$0xff]
    %v96 = vld [vmem:[#allocation5 + $0xa0] sm:$0xff]
    %v97 = vld [vmem:[#allocation5 + $0xa8] sm:$0xff]
    %v98 = vld [vmem:[#allocation5 + $0xb0] sm:$0xff]
    %v99 = vld [vmem:[#allocation5 + $0xb8] sm:$0xff]
    %v100 = vld [vmem:[#allocation5 + $0xc0] sm:$0xff]
    %v101 = vld [vmem:[#allocation5 + $0xc8] sm:$0xff]
    %v102 = vld [vmem:[#allocation5 + $0xd0] sm:$0xff]
    %v103 = vld [vmem:[#allocation5 + $0xd8] sm:$0xff]
    %v104 = vld [vmem:[#allocation5 + $0xe0] sm:$0xff]
    %v105 = vld [vmem:[#allocation5 + $0xe8] sm:$0xff]
    %v106 = vld [vmem:[#allocation5 + $0xf0] sm:$0xff]
    %v107 = vld [vmem:[#allocation5 + $0xf8] sm:$0xff]
    %v108 = vld [vmem:[#allocation5 + $0x100] sm:$0xff]
    %v109 = vld [vmem:[#allocation5 + $0x108] sm:$0xff]
    %v110 = vld [vmem:[#allocation5 + $0x110] sm:$0xff]
    %v111 = vld [vmem:[#allocation5 + $0x118] sm:$0xff]
    %v112 = vld [vmem:[#allocation5 + $0x120] sm:$0xff]
    %v113 = vld [vmem:[#allocation5 + $0x128] sm:$0xff]
    %v114 = vld [vmem:[#allocation5 + $0x130] sm:$0xff]
    %v115 = vld [vmem:[#allocation5 + $0x138] sm:$0xff]
    %v116 = vld [vmem:[#allocation5 + $0x140] sm:$0xff]
    %v117 = vld [vmem:[#allocation5 + $0x148] sm:$0xff]
    %v118 = vld [vmem:[#allocation5 + $0x150] sm:$0xff]
    %v119 = vld [vmem:[#allocation5 + $0x158] sm:$0xff]
    %v120 = vld [vmem:[#allocation5 + $0x160] sm:$0xff]
    %v121 = vld [vmem:[#allocation5 + $0x168] sm:$0xff]
    %v122 = vld [vmem:[#allocation5 + $0x170] sm:$0xff]
    %v123 = vld [vmem:[#allocation5 + $0x178] sm:$0xff]
    %v124 = vld [vmem:[#allocation5 + $0x180] sm:$0xff]
    %v125 = vld [vmem:[#allocation5 + $0x188] sm:$0xff]
    %v126 = vld [vmem:[#allocation5 + $0x190] sm:$0xff]
    %v127 = vld [vmem:[#allocation5 + $0x198] sm:$0xff]
    %v128 = vld [vmem:[#allocation5 + $0x1a0] sm:$0xff]
    %v129 = vld [vmem:[#allocation5 + $0x1a8] sm:$0xff]
    %v130 = vld [vmem:[#allocation5 + $0x1b0] sm:$0xff]
    %v131 = vld [vmem:[#allocation5 + $0x1b8] sm:$0xff]
    %v132 = vld [vmem:[#allocation5 + $0x1c0] sm:$0xff]
    %v133 = vld [vmem:[#allocation5 + $0x1c8] sm:$0xff]
    %v134 = vld [vmem:[#allocation5 + $0x1d0] sm:$0xff]
    %v135 = vld [vmem:[#allocation5 + $0x1d8] sm:$0xff]
    %v136 = vld [vmem:[#allocation5 + $0x1e0] sm:$0xff]
    %v137 = vld [vmem:[#allocation5 + $0x1e8] sm:$0xff]
    %v138 = vld [vmem:[#allocation5 + $0x1f0] sm:$0xff]
    %v139 = vld [vmem:[#allocation5 + $0x1f8] sm:$0xff]
    %v140 = vld [vmem:[#allocation5 + $0x200] sm:$0xff]
    %v141 = vld [vmem:[#allocation5 + $0x208] sm:$0xff]
    %v142 = vld [vmem:[#allocation5 + $0x210] sm:$0xff]
    %v143 = vld [vmem:[#allocation5 + $0x218] sm:$0xff]
    %v144 = vld [vmem:[#allocation5 + $0x220] sm:$0xff]
    %v145 = vld [vmem:[#allocation5 + $0x228] sm:$0xff]
    %v146 = vld [vmem:[#allocation5 + $0x230] sm:$0xff]
    %v147 = vld [vmem:[#allocation5 + $0x238] sm:$0xff]
    %v148 = vld [vmem:[#allocation5 + $0x240] sm:$0xff]
    %v149 = vld [vmem:[#allocation5 + $0x248] sm:$0xff]
    %v150 = vld [vmem:[#allocation5 + $0x250] sm:$0xff]
    %v151 = vld [vmem:[#allocation5 + $0x258] sm:$0xff]
    %v152 = vld [vmem:[#allocation5 + $0x260] sm:$0xff]
    %v153 = vld [vmem:[#allocation5 + $0x268] sm:$0xff]
    %v154 = vld [vmem:[#allocation5 + $0x270] sm:$0xff]
    %v155 = vld [vmem:[#allocation5 + $0x278] sm:$0xff]
    %v156 = vld [vmem:[#allocation5 + $0x280] sm:$0xff]
    %v157 = vld [vmem:[#allocation5 + $0x288] sm:$0xff]
    %v158 = vld [vmem:[#allocation5 + $0x290] sm:$0xff]
    %v159 = vld [vmem:[#allocation5 + $0x298] sm:$0xff]
    %v160 = vld [vmem:[#allocation5 + $0x2a0] sm:$0xff]
    %v161 = vld [vmem:[#allocation5 + $0x2a8] sm:$0xff]
    %v162 = vld [vmem:[#allocation5 + $0x2b0] sm:$0xff]
    %v163 = vld [vmem:[#allocation5 + $0x2b8] sm:$0xff]
    %v164 = vld [vmem:[#allocation5 + $0x2c0] sm:$0xff]
    %v165 = vld [vmem:[#allocation5 + $0x2c8] sm:$0xff]
    %v166 = vld [vmem:[#allocation5 + $0x2d0] sm:$0xff]
    %v167 = vld [vmem:[#allocation5 + $0x2d8] sm:$0xff]
    %v168 = vld [vmem:[#allocation5 + $0x2e0] sm:$0xff]
    %v169 = vld [vmem:[#allocation5 + $0x2e8] sm:$0xff]
    %v170 = vld [vmem:[#allocation5 + $0x2f0] sm:$0xff]
    %v171 = vld [vmem:[#allocation5 + $0x2f8] sm:$0xff]
    %v172 = vld [vmem:[#allocation5 + $0x300] sm:$0xff]
    %v173 = vld [vmem:[#allocation5 + $0x308] sm:$0xff]
    %v174 = vld [vmem:[#allocation5 + $0x310] sm:$0xff]
    %v175 = vld [vmem:[#allocation5 + $0x318] sm:$0xff]
    %v176 = vld [vmem:[#allocation5 + $0x320] sm:$0xff]
    %v177 = vld [vmem:[#allocation5 + $0x328] sm:$0xff]
    %v178 = vld [vmem:[#allocation5 + $0x330] sm:$0xff]
    %v179 = vld [vmem:[#allocation5 + $0x338] sm:$0xff]
    %v180 = vld [vmem:[#allocation5 + $0x340] sm:$0xff]
    %v181 = vld [vmem:[#allocation5 + $0x348] sm:$0xff]
    %v182 = vld [vmem:[#allocation5 + $0x350] sm:$0xff]
    %v183 = vld [vmem:[#allocation5 + $0x358] sm:$0xff]
    %v184 = vld [vmem:[#allocation5 + $0x360] sm:$0xff]
    %v185 = vld [vmem:[#allocation5 + $0x368] sm:$0xff]
    %v186 = vld [vmem:[#allocation5 + $0x370] sm:$0xff]
    %v187 = vld [vmem:[#allocation5 + $0x378] sm:$0xff]
    %v188 = vld [vmem:[#allocation5 + $0x380] sm:$0xff]
    %v189 = vld [vmem:[#allocation5 + $0x388] sm:$0xff]
    %v190 = vld [vmem:[#allocation5 + $0x390] sm:$0xff]
    %v191 = vld [vmem:[#allocation5 + $0x398] sm:$0xff]
    %v192 = vld [vmem:[#allocation5 + $0x3a0] sm:$0xff]
    %v193 = vld [vmem:[#allocation5 + $0x3a8] sm:$0xff]
    %v194 = vld [vmem:[#allocation5 + $0x3b0] sm:$0xff]
    %v195 = vld [vmem:[#allocation5 + $0x3b8] sm:$0xff]
    %v196 = vld [vmem:[#allocation5 + $0x3c0] sm:$0xff]
    %v197 = vld [vmem:[#allocation5 + $0x3c8] sm:$0xff]
    %v198 = vld [vmem:[#allocation5 + $0x3d0] sm:$0xff]
    %v199 = vld [vmem:[#allocation5 + $0x3d8] sm:$0xff]
    %v200 = vld [vmem:[#allocation5 + $0x3e0] sm:$0xff]
    %v201 = vld [vmem:[#allocation5 + $0x3e8] sm:$0xff]
    %v202 = vld [vmem:[#allocation5 + $0x3f0] sm:$0xff]
    %v203 = vld [vmem:[#allocation5 + $0x3f8] sm:$0xff]
    %v204 = vld [vmem:[#allocation5 + $0x400] sm:$0xff]
    %v205 = vld [vmem:[#allocation5 + $0x408] sm:$0xff]
    %v206 = vld [vmem:[#allocation5 + $0x410] sm:$0xff]
    %v207 = vld [vmem:[#allocation5 + $0x418] sm:$0xff]
    %v208 = vld [vmem:[#allocation5 + $0x420] sm:$0xff]
    %v209 = vld [vmem:[#allocation5 + $0x428] sm:$0xff]
    %v210 = vld [vmem:[#allocation5 + $0x430] sm:$0xff]
    %v211 = vld [vmem:[#allocation5 + $0x438] sm:$0xff]
    %v212 = vld [vmem:[#allocation5 + $0x440] sm:$0xff]
    %v213 = vld [vmem:[#allocation5 + $0x448] sm:$0xff]
    %v214 = vld [vmem:[#allocation5 + $0x450] sm:$0xff]
    %v215 = vld [vmem:[#allocation5 + $0x458] sm:$0xff]
    %v216 = vld [vmem:[#allocation5 + $0x460] sm:$0xff]
    %v217 = vld [vmem:[#allocation5 + $0x468] sm:$0xff]
    %v218 = vld [vmem:[#allocation5 + $0x470] sm:$0xff]
    %v219 = vld [vmem:[#allocation5 + $0x478] sm:$0xff]
    %v220 = vld [vmem:[#allocation5 + $0x480] sm:$0xff]
    %v221 = vld [vmem:[#allocation5 + $0x488] sm:$0xff]
    %v222 = vld [vmem:[#allocation5 + $0x490] sm:$0xff]
    %v223 = vld [vmem:[#allocation5 + $0x498] sm:$0xff]
    %v224 = vld [vmem:[#allocation5 + $0x4a0] sm:$0xff]
    %v225 = vld [vmem:[#allocation5 + $0x4a8] sm:$0xff]
    %v226 = vld [vmem:[#allocation5 + $0x4b0] sm:$0xff]
    %v227 = vld [vmem:[#allocation5 + $0x4b8] sm:$0xff]
    %v228 = vld [vmem:[#allocation5 + $0x4c0] sm:$0xff]
    %v229 = vld [vmem:[#allocation5 + $0x4c8] sm:$0xff]
    %v230 = vld [vmem:[#allocation5 + $0x4d0] sm:$0xff]
    %v231 = vld [vmem:[#allocation5 + $0x4d8] sm:$0xff]
    %v232 = vld [vmem:[#allocation5 + $0x4e0] sm:$0xff]
    %v233 = vld [vmem:[#allocation5 + $0x4e8] sm:$0xff]
    %v234 = vld [vmem:[#allocation5 + $0x4f0] sm:$0xff]
    %v235 = vld [vmem:[#allocation5 + $0x4f8] sm:$0xff]
    %v236 = vld [vmem:[#allocation5 + $0x500] sm:$0xff]
    %v237 = vld [vmem:[#allocation5 + $0x508] sm:$0xff]
    %v238 = vld [vmem:[#allocation5 + $0x510] sm:$0xff]
    %v239 = vld [vmem:[#allocation5 + $0x518] sm:$0xff]
    %v240 = vld [vmem:[#allocation5 + $0x520] sm:$0xff]
    %v241 = vld [vmem:[#allocation5 + $0x528] sm:$0xff]
    %v242 = vld [vmem:[#allocation5 + $0x530] sm:$0xff]
    %v243 = vld [vmem:[#allocation5 + $0x538] sm:$0xff]
    %v244 = vld [vmem:[#allocation5 + $0x540] sm:$0xff]
    %v245 = vld [vmem:[#allocation5 + $0x548] sm:$0xff]
    %v246 = vld [vmem:[#allocation5 + $0x550] sm:$0xff]
    %v247 = vld [vmem:[#allocation5 + $0x558] sm:$0xff]
    %v248 = vld [vmem:[#allocation5 + $0x560] sm:$0xff]
    %v249 = vld [vmem:[#allocation5 + $0x568] sm:$0xff]
    %v250 = vld [vmem:[#allocation5 + $0x570] sm:$0xff]
    %v251 = vld [vmem:[#allocation5 + $0x578] sm:$0xff]
    %v252 = vld [vmem:[#allocation5 + $0x580] sm:$0xff]
    %v253 = vld [vmem:[#allocation5 + $0x588] sm:$0xff]
    %v254 = vld [vmem:[#allocation5 + $0x590] sm:$0xff]
    %v255 = vld [vmem:[#allocation5 + $0x598] sm:$0xff]
    %v256 = vld [vmem:[#allocation5 + $0x5a0] sm:$0xff]
    %v257 = vld [vmem:[#allocation5 + $0x5a8] sm:$0xff]
    %v258 = vld [vmem:[#allocation5 + $0x5b0] sm:$0xff]
    %v259 = vld [vmem:[#allocation5 + $0x5b8] sm:$0xff]
    %v260 = vld [vmem:[#allocation5 + $0x5c0] sm:$0xff]
    %v261 = vld [vmem:[#allocation5 + $0x5c8] sm:$0xff]
    %v262 = vld [vmem:[#allocation5 + $0x5d0] sm:$0xff]
    %v263 = vld [vmem:[#allocation5 + $0x5d8] sm:$0xff]
    %v264 = vld [vmem:[#allocation5 + $0x5e0] sm:$0xff]
    %v265 = vld [vmem:[#allocation5 + $0x5e8] sm:$0xff]
    %v266 = vld [vmem:[#allocation5 + $0x5f0] sm:$0xff]
    %v267 = vld [vmem:[#allocation5 + $0x5f8] sm:$0xff]
    %v268 = vld [vmem:[#allocation5 + $0x600] sm:$0xff]
    %v269 = vld [vmem:[#allocation5 + $0x608] sm:$0xff]
    %v270 = vld [vmem:[#allocation5 + $0x610] sm:$0xff]
    %v271 = vld [vmem:[#allocation5 + $0x618] sm:$0xff]
    %v272 = vld [vmem:[#allocation5 + $0x620] sm:$0xff]
    %v273 = vld [vmem:[#allocation5 + $0x628] sm:$0xff]
    %v274 = vld [vmem:[#allocation5 + $0x630] sm:$0xff]
    %v275 = vld [vmem:[#allocation5 + $0x638] sm:$0xff]
    %v276 = vld [vmem:[#allocation5 + $0x640] sm:$0xff]
    %v277 = vld [vmem:[#allocation5 + $0x648] sm:$0xff]
    %v278 = vld [vmem:[#allocation5 + $0x650] sm:$0xff]
    %v279 = vld [vmem:[#allocation5 + $0x658] sm:$0xff]
    %v280 = vld [vmem:[#allocation5 + $0x660] sm:$0xff]
    %v281 = vld [vmem:[#allocation5 + $0x668] sm:$0xff]
    %v282 = vld [vmem:[#allocation5 + $0x670] sm:$0xff]
    %v283 = vld [vmem:[#allocation5 + $0x678] sm:$0xff]
    %v284 = vld [vmem:[#allocation5 + $0x680] sm:$0xff]
    %v285 = vld [vmem:[#allocation5 + $0x688] sm:$0xff]
    %v286 = vld [vmem:[#allocation5 + $0x690] sm:$0xff]
    %v287 = vld [vmem:[#allocation5 + $0x698] sm:$0xff]
    %v288 = vld [vmem:[#allocation5 + $0x6a0] sm:$0xff]
    %v289 = vld [vmem:[#allocation5 + $0x6a8] sm:$0xff]
    %v290 = vld [vmem:[#allocation5 + $0x6b0] sm:$0xff]
    %v291 = vld [vmem:[#allocation5 + $0x6b8] sm:$0xff]
    %v292 = vld [vmem:[#allocation5 + $0x6c0] sm:$0xff]
    %v293 = vld [vmem:[#allocation5 + $0x6c8] sm:$0xff]
    %v294 = vld [vmem:[#allocation5 + $0x6d0] sm:$0xff]
    %v295 = vld [vmem:[#allocation5 + $0x6d8] sm:$0xff]
    %v296 = vld [vmem:[#allocation5 + $0x6e0] sm:$0xff]
    %v297 = vld [vmem:[#allocation5 + $0x6e8] sm:$0xff]
    %v298 = vld [vmem:[#allocation5 + $0x6f0] sm:$0xff]
    %v299 = vld [vmem:[#allocation5 + $0x6f8] sm:$0xff]
    %v300 = vld [vmem:[#allocation5 + $0x700] sm:$0xff]
    %v301 = vld [vmem:[#allocation5 + $0x708] sm:$0xff]
    %v302 = vld [vmem:[#allocation5 + $0x710] sm:$0xff]
    %v303 = vld [vmem:[#allocation5 + $0x718] sm:$0xff]
    %v304 = vld [vmem:[#allocation5 + $0x720] sm:$0xff]
    %v305 = vld [vmem:[#allocation5 + $0x728] sm:$0xff]
    %v306 = vld [vmem:[#allocation5 + $0x730] sm:$0xff]
    %v307 = vld [vmem:[#allocation5 + $0x738] sm:$0xff]
    %v308 = vld [vmem:[#allocation5 + $0x740] sm:$0xff]
    %v309 = vld [vmem:[#allocation5 + $0x748] sm:$0xff]
    %v310 = vld [vmem:[#allocation5 + $0x750] sm:$0xff]
    %v311 = vld [vmem:[#allocation5 + $0x758] sm:$0xff]
    %v312 = vld [vmem:[#allocation5 + $0x760] sm:$0xff]
    %v313 = vld [vmem:[#allocation5 + $0x768] sm:$0xff]
    %v314 = vld [vmem:[#allocation5 + $0x770] sm:$0xff]
    %v315 = vld [vmem:[#allocation5 + $0x778] sm:$0xff]
    %v316 = vld [vmem:[#allocation5 + $0x780] sm:$0xff]
    %v317 = vld [vmem:[#allocation5 + $0x788] sm:$0xff]
    %v318 = vld [vmem:[#allocation5 + $0x790] sm:$0xff]
    %v319 = vld [vmem:[#allocation5 + $0x798] sm:$0xff]
    %v320 = vld [vmem:[#allocation5 + $0x7a0] sm:$0xff]
    %v321 = vld [vmem:[#allocation5 + $0x7a8] sm:$0xff]
    %v322 = vld [vmem:[#allocation5 + $0x7b0] sm:$0xff]
    %v323 = vld [vmem:[#allocation5 + $0x7b8] sm:$0xff]
    %v324 = vld [vmem:[#allocation5 + $0x7c0] sm:$0xff]
    %v325 = vld [vmem:[#allocation5 + $0x7c8] sm:$0xff]
    %v326 = vld [vmem:[#allocation5 + $0x7d0] sm:$0xff]
    %v327 = vld [vmem:[#allocation5 + $0x7d8] sm:$0xff]
    %v328 = vld [vmem:[#allocation5 + $0x7e0] sm:$0xff]
    %v329 = vld [vmem:[#allocation5 + $0x7e8] sm:$0xff]
    %v330 = vld [vmem:[#allocation5 + $0x7f0] sm:$0xff]
    %v331 = vld [vmem:[#allocation5 + $0x7f8] sm:$0xff]
    %v332 = vld [vmem:[#allocation7] sm:$0xff]
    %v333 = vld [vmem:[#allocation7 + $0x8] sm:$0xff]
    %v334 = vld [vmem:[#allocation7 + $0x10] sm:$0xff]
    %v335 = vld [vmem:[#allocation7 + $0x18] sm:$0xff]
    %v336 = vld [vmem:[#allocation7 + $0x20] sm:$0xff]
    %v337 = vld [vmem:[#allocation7 + $0x28] sm:$0xff]
    %v338 = vld [vmem:[#allocation7 + $0x30] sm:$0xff]
    %v339 = vld [vmem:[#allocation7 + $0x38] sm:$0xff]
    %v340 = vld [vmem:[#allocation7 + $0x40] sm:$0xff]
    %v341 = vld [vmem:[#allocation7 + $0x48] sm:$0xff]
    %v342 = vld [vmem:[#allocation7 + $0x50] sm:$0xff]
    %v343 = vld [vmem:[#allocation7 + $0x58] sm:$0xff]
    %v344 = vld [vmem:[#allocation7 + $0x60] sm:$0xff]
    %v345 = vld [vmem:[#allocation7 + $0x68] sm:$0xff]
    %v346 = vld [vmem:[#allocation7 + $0x70] sm:$0xff]
    %v347 = vld [vmem:[#allocation7 + $0x78] sm:$0xff]
    %v348 = vld [vmem:[#allocation7 + $0x80] sm:$0xff]
    %v349 = vld [vmem:[#allocation7 + $0x88] sm:$0xff]
    %v350 = vld [vmem:[#allocation7 + $0x90] sm:$0xff]
    %v351 = vld [vmem:[#allocation7 + $0x98] sm:$0xff]
    %v352 = vld [vmem:[#allocation7 + $0xa0] sm:$0xff]
    %v353 = vld [vmem:[#allocation7 + $0xa8] sm:$0xff]
    %v354 = vld [vmem:[#allocation7 + $0xb0] sm:$0xff]
    %v355 = vld [vmem:[#allocation7 + $0xb8] sm:$0xff]
    %v356 = vld [vmem:[#allocation7 + $0xc0] sm:$0xff]
    %v357 = vld [vmem:[#allocation7 + $0xc8] sm:$0xff]
    %v358 = vld [vmem:[#allocation7 + $0xd0] sm:$0xff]
    %v359 = vld [vmem:[#allocation7 + $0xd8] sm:$0xff]
    %v360 = vld [vmem:[#allocation7 + $0xe0] sm:$0xff]
    %v361 = vld [vmem:[#allocation7 + $0xe8] sm:$0xff]
    %v362 = vld [vmem:[#allocation7 + $0xf0] sm:$0xff]
    %v363 = vld [vmem:[#allocation7 + $0xf8] sm:$0xff]
    %v364 = vld [vmem:[#allocation7 + $0x100] sm:$0xff]
    %v365 = vld [vmem:[#allocation7 + $0x108] sm:$0xff]
    %v366 = vld [vmem:[#allocation7 + $0x110] sm:$0xff]
    %v367 = vld [vmem:[#allocation7 + $0x118] sm:$0xff]
    %v368 = vld [vmem:[#allocation7 + $0x120] sm:$0xff]
    %v369 = vld [vmem:[#allocation7 + $0x128] sm:$0xff]
    %v370 = vld [vmem:[#allocation7 + $0x130] sm:$0xff]
    %v371 = vld [vmem:[#allocation7 + $0x138] sm:$0xff]
    %v372 = vld [vmem:[#allocation7 + $0x140] sm:$0xff]
    %v373 = vld [vmem:[#allocation7 + $0x148] sm:$0xff]
    %v374 = vld [vmem:[#allocation7 + $0x150] sm:$0xff]
    %v375 = vld [vmem:[#allocation7 + $0x158] sm:$0xff]
    %v376 = vld [vmem:[#allocation7 + $0x160] sm:$0xff]
    %v377 = vld [vmem:[#allocation7 + $0x168] sm:$0xff]
    %v378 = vld [vmem:[#allocation7 + $0x170] sm:$0xff]
    %v379 = vld [vmem:[#allocation7 + $0x178] sm:$0xff]
    %v380 = vld [vmem:[#allocation7 + $0x180] sm:$0xff]
    %v381 = vld [vmem:[#allocation7 + $0x188] sm:$0xff]
    %v382 = vld [vmem:[#allocation7 + $0x190] sm:$0xff]
    %v383 = vld [vmem:[#allocation7 + $0x198] sm:$0xff]
    %v384 = vld [vmem:[#allocation7 + $0x1a0] sm:$0xff]
    %v385 = vld [vmem:[#allocation7 + $0x1a8] sm:$0xff]
    %v386 = vld [vmem:[#allocation7 + $0x1b0] sm:$0xff]
    %v387 = vld [vmem:[#allocation7 + $0x1b8] sm:$0xff]
    %v388 = vld [vmem:[#allocation7 + $0x1c0] sm:$0xff]
    %v389 = vld [vmem:[#allocation7 + $0x1c8] sm:$0xff]
    %v390 = vld [vmem:[#allocation7 + $0x1d0] sm:$0xff]
    %v391 = vld [vmem:[#allocation7 + $0x1d8] sm:$0xff]
    %v392 = vld [vmem:[#allocation7 + $0x1e0] sm:$0xff]
    %v393 = vld [vmem:[#allocation7 + $0x1e8] sm:$0xff]
    %v394 = vld [vmem:[#allocation7 + $0x1f0] sm:$0xff]
    %v395 = vld [vmem:[#allocation7 + $0x1f8] sm:$0xff]
    %v396 = vld [vmem:[#allocation7 + $0x200] sm:$0xff]
    %v397 = vld [vmem:[#allocation7 + $0x208] sm:$0xff]
    %v398 = vld [vmem:[#allocation7 + $0x210] sm:$0xff]
    %v399 = vld [vmem:[#allocation7 + $0x218] sm:$0xff]
    %v400 = vld [vmem:[#allocation7 + $0x220] sm:$0xff]
    %v401 = vld [vmem:[#allocation7 + $0x228] sm:$0xff]
    %v402 = vld [vmem:[#allocation7 + $0x230] sm:$0xff]
    %v403 = vld [vmem:[#allocation7 + $0x238] sm:$0xff]
    %v404 = vld [vmem:[#allocation7 + $0x240] sm:$0xff]
    %v405 = vld [vmem:[#allocation7 + $0x248] sm:$0xff]
    %v406 = vld [vmem:[#allocation7 + $0x250] sm:$0xff]
    %v407 = vld [vmem:[#allocation7 + $0x258] sm:$0xff]
    %v408 = vld [vmem:[#allocation7 + $0x260] sm:$0xff]
    %v409 = vld [vmem:[#allocation7 + $0x268] sm:$0xff]
    %v410 = vld [vmem:[#allocation7 + $0x270] sm:$0xff]
    %v411 = vld [vmem:[#allocation7 + $0x278] sm:$0xff]
    %v412 = vld [vmem:[#allocation7 + $0x280] sm:$0xff]
    %v413 = vld [vmem:[#allocation7 + $0x288] sm:$0xff]
    %v414 = vld [vmem:[#allocation7 + $0x290] sm:$0xff]
    %v415 = vld [vmem:[#allocation7 + $0x298] sm:$0xff]
    %v416 = vld [vmem:[#allocation7 + $0x2a0] sm:$0xff]
    %v417 = vld [vmem:[#allocation7 + $0x2a8] sm:$0xff]
    %v418 = vld [vmem:[#allocation7 + $0x2b0] sm:$0xff]
    %v419 = vld [vmem:[#allocation7 + $0x2b8] sm:$0xff]
    %v420 = vld [vmem:[#allocation7 + $0x2c0] sm:$0xff]
    %v421 = vld [vmem:[#allocation7 + $0x2c8] sm:$0xff]
    %v422 = vld [vmem:[#allocation7 + $0x2d0] sm:$0xff]
    %v423 = vld [vmem:[#allocation7 + $0x2d8] sm:$0xff]
    %v424 = vld [vmem:[#allocation7 + $0x2e0] sm:$0xff]
    %v425 = vld [vmem:[#allocation7 + $0x2e8] sm:$0xff]
    %v426 = vld [vmem:[#allocation7 + $0x2f0] sm:$0xff]
    %v427 = vld [vmem:[#allocation7 + $0x2f8] sm:$0xff]
    %v428 = vld [vmem:[#allocation7 + $0x300] sm:$0xff]
    %v429 = vld [vmem:[#allocation7 + $0x308] sm:$0xff]
    %v430 = vld [vmem:[#allocation7 + $0x310] sm:$0xff]
    %v431 = vld [vmem:[#allocation7 + $0x318] sm:$0xff]
    %v432 = vld [vmem:[#allocation7 + $0x320] sm:$0xff]
    %v433 = vld [vmem:[#allocation7 + $0x328] sm:$0xff]
    %v434 = vld [vmem:[#allocation7 + $0x330] sm:$0xff]
    %v435 = vld [vmem:[#allocation7 + $0x338] sm:$0xff]
    %v436 = vld [vmem:[#allocation7 + $0x340] sm:$0xff]
    %v437 = vld [vmem:[#allocation7 + $0x348] sm:$0xff]
    %v438 = vld [vmem:[#allocation7 + $0x350] sm:$0xff]
    %v439 = vld [vmem:[#allocation7 + $0x358] sm:$0xff]
    %v440 = vld [vmem:[#allocation7 + $0x360] sm:$0xff]
    %v441 = vld [vmem:[#allocation7 + $0x368] sm:$0xff]
    %v442 = vld [vmem:[#allocation7 + $0x370] sm:$0xff]
    %v443 = vld [vmem:[#allocation7 + $0x378] sm:$0xff]
    %v444 = vld [vmem:[#allocation7 + $0x380] sm:$0xff]
    %v445 = vld [vmem:[#allocation7 + $0x388] sm:$0xff]
    %v446 = vld [vmem:[#allocation7 + $0x390] sm:$0xff]
    %v447 = vld [vmem:[#allocation7 + $0x398] sm:$0xff]
    %v448 = vld [vmem:[#allocation7 + $0x3a0] sm:$0xff]
    %v449 = vld [vmem:[#allocation7 + $0x3a8] sm:$0xff]
    %v450 = vld [vmem:[#allocation7 + $0x3b0] sm:$0xff]
    %v451 = vld [vmem:[#allocation7 + $0x3b8] sm:$0xff]
    %v452 = vld [vmem:[#allocation7 + $0x3c0] sm:$0xff]
    %v453 = vld [vmem:[#allocation7 + $0x3c8] sm:$0xff]
    %v454 = vld [vmem:[#allocation7 + $0x3d0] sm:$0xff]
    %v455 = vld [vmem:[#allocation7 + $0x3d8] sm:$0xff]
    %v456 = vld [vmem:[#allocation7 + $0x3e0] sm:$0xff]
    %v457 = vld [vmem:[#allocation7 + $0x3e8] sm:$0xff]
    %v458 = vld [vmem:[#allocation7 + $0x3f0] sm:$0xff]
    %v459 = vld [vmem:[#allocation7 + $0x3f8] sm:$0xff]
    %v464 = vunpack.c.l.b16 %v72
    %v465 = vunpack.c.h.b16 %v72
    %v466 = vunpack.c.l.b16 %v73
    %v467 = vunpack.c.h.b16 %v73
    %v468 = vunpack.c.l.b16 %v74
    %v469 = vunpack.c.h.b16 %v74
    %v470 = vunpack.c.l.b16 %v75
    %v471 = vunpack.c.h.b16 %v75
    %v472 = vpack.c.b16 %v464, %v464
    %v473 = vpack.c.b16 %v465, %v465
    %v474 = vpack.c.b16 %v466, %v466
    %v475 = vpack.c.b16 %v467, %v467
    %v476 = vpack.c.b16 %v468, %v468
    %v477 = vpack.c.b16 %v469, %v469
    %v478 = vpack.c.b16 %v470, %v470
    %v479 = vpack.c.b16 %v471, %v471
    %v744 = vunpack.c.l.b16 %v76
    %v745 = vunpack.c.h.b16 %v76
    %v746 = vunpack.c.l.b16 %v77
    %v747 = vunpack.c.h.b16 %v77
    %v748 = vunpack.c.l.b16 %v78
    %v749 = vunpack.c.h.b16 %v78
    %v750 = vunpack.c.l.b16 %v79
    %v751 = vunpack.c.h.b16 %v79
    %v752 = vunpack.c.l.b16 %v80
    %v753 = vunpack.c.h.b16 %v80
    %v754 = vunpack.c.l.b16 %v81
    %v755 = vunpack.c.h.b16 %v81
    %v756 = vunpack.c.l.b16 %v82
    %v757 = vunpack.c.h.b16 %v82
    %v758 = vunpack.c.l.b16 %v83
    %v759 = vunpack.c.h.b16 %v83
    %v760 = vunpack.c.l.b16 %v84
    %v761 = vunpack.c.h.b16 %v84
    %v762 = vunpack.c.l.b16 %v85
    %v763 = vunpack.c.h.b16 %v85
    %v764 = vunpack.c.l.b16 %v86
    %v765 = vunpack.c.h.b16 %v86
    %v766 = vunpack.c.l.b16 %v87
    %v767 = vunpack.c.h.b16 %v87
    %v768 = vunpack.c.l.b16 %v88
    %v769 = vunpack.c.h.b16 %v88
    %v770 = vunpack.c.l.b16 %v89
    %v771 = vunpack.c.h.b16 %v89
    %v772 = vunpack.c.l.b16 %v90
    %v773 = vunpack.c.h.b16 %v90
    %v774 = vunpack.c.l.b16 %v91
    %v775 = vunpack.c.h.b16 %v91
    %v776 = vunpack.c.l.b16 %v92
    %v777 = vunpack.c.h.b16 %v92
    %v778 = vunpack.c.l.b16 %v93
    %v779 = vunpack.c.h.b16 %v93
    %v780 = vunpack.c.l.b16 %v94
    %v781 = vunpack.c.h.b16 %v94
    %v782 = vunpack.c.l.b16 %v95
    %v783 = vunpack.c.h.b16 %v95
    %v784 = vunpack.c.l.b16 %v96
    %v785 = vunpack.c.h.b16 %v96
    %v786 = vunpack.c.l.b16 %v97
    %v787 = vunpack.c.h.b16 %v97
    %v788 = vunpack.c.l.b16 %v98
    %v789 = vunpack.c.h.b16 %v98
    %v790 = vunpack.c.l.b16 %v99
    %v791 = vunpack.c.h.b16 %v99
    %v792 = vunpack.c.l.b16 %v100
    %v793 = vunpack.c.h.b16 %v100
    %v794 = vunpack.c.l.b16 %v101
    %v795 = vunpack.c.h.b16 %v101
    %v796 = vunpack.c.l.b16 %v102
    %v797 = vunpack.c.h.b16 %v102
    %v798 = vunpack.c.l.b16 %v103
    %v799 = vunpack.c.h.b16 %v103
    %v800 = vunpack.c.l.b16 %v104
    %v801 = vunpack.c.h.b16 %v104
    %v802 = vunpack.c.l.b16 %v105
    %v803 = vunpack.c.h.b16 %v105
    %v804 = vunpack.c.l.b16 %v106
    %v805 = vunpack.c.h.b16 %v106
    %v806 = vunpack.c.l.b16 %v107
    %v807 = vunpack.c.h.b16 %v107
    %v808 = vunpack.c.l.b16 %v108
    %v809 = vunpack.c.h.b16 %v108
    %v810 = vunpack.c.l.b16 %v109
    %v811 = vunpack.c.h.b16 %v109
    %v812 = vunpack.c.l.b16 %v110
    %v813 = vunpack.c.h.b16 %v110
    %v814 = vunpack.c.l.b16 %v111
    %v815 = vunpack.c.h.b16 %v111
    %v816 = vunpack.c.l.b16 %v112
    %v817 = vunpack.c.h.b16 %v112
    %v818 = vunpack.c.l.b16 %v113
    %v819 = vunpack.c.h.b16 %v113
    %v820 = vunpack.c.l.b16 %v114
    %v821 = vunpack.c.h.b16 %v114
    %v822 = vunpack.c.l.b16 %v115
    %v823 = vunpack.c.h.b16 %v115
    %v824 = vunpack.c.l.b16 %v116
    %v825 = vunpack.c.h.b16 %v116
    %v826 = vunpack.c.l.b16 %v117
    %v827 = vunpack.c.h.b16 %v117
    %v828 = vunpack.c.l.b16 %v118
    %v829 = vunpack.c.h.b16 %v118
    %v830 = vunpack.c.l.b16 %v119
    %v831 = vunpack.c.h.b16 %v119
    %v832 = vunpack.c.l.b16 %v120
    %v833 = vunpack.c.h.b16 %v120
    %v834 = vunpack.c.l.b16 %v121
    %v835 = vunpack.c.h.b16 %v121
    %v836 = vunpack.c.l.b16 %v122
    %v837 = vunpack.c.h.b16 %v122
    %v838 = vunpack.c.l.b16 %v123
    %v839 = vunpack.c.h.b16 %v123
    %v840 = vunpack.c.l.b16 %v124
    %v841 = vunpack.c.h.b16 %v124
    %v842 = vunpack.c.l.b16 %v125
    %v843 = vunpack.c.h.b16 %v125
    %v844 = vunpack.c.l.b16 %v126
    %v845 = vunpack.c.h.b16 %v126
    %v846 = vunpack.c.l.b16 %v127
    %v847 = vunpack.c.h.b16 %v127
    %v848 = vunpack.c.l.b16 %v128
    %v849 = vunpack.c.h.b16 %v128
    %v850 = vunpack.c.l.b16 %v129
    %v851 = vunpack.c.h.b16 %v129
    %v852 = vunpack.c.l.b16 %v130
    %v853 = vunpack.c.h.b16 %v130
    %v854 = vunpack.c.l.b16 %v131
    %v855 = vunpack.c.h.b16 %v131
    %v856 = vunpack.c.l.b16 %v132
    %v857 = vunpack.c.h.b16 %v132
    %v858 = vunpack.c.l.b16 %v133
    %v859 = vunpack.c.h.b16 %v133
    %v860 = vunpack.c.l.b16 %v134
    %v861 = vunpack.c.h.b16 %v134
    %v862 = vunpack.c.l.b16 %v135
    %v863 = vunpack.c.h.b16 %v135
    %v864 = vunpack.c.l.b16 %v136
    %v865 = vunpack.c.h.b16 %v136
    %v866 = vunpack.c.l.b16 %v137
    %v867 = vunpack.c.h.b16 %v137
    %v868 = vunpack.c.l.b16 %v138
    %v869 = vunpack.c.h.b16 %v138
    %v870 = vunpack.c.l.b16 %v139
    %v871 = vunpack.c.h.b16 %v139
    %v872 = vunpack.c.l.b16 %v140
    %v873 = vunpack.c.h.b16 %v140
    %v874 = vunpack.c.l.b16 %v141
    %v875 = vunpack.c.h.b16 %v141
    %v876 = vunpack.c.l.b16 %v142
    %v877 = vunpack.c.h.b16 %v142
    %v878 = vunpack.c.l.b16 %v143
    %v879 = vunpack.c.h.b16 %v143
    %v880 = vunpack.c.l.b16 %v144
    %v881 = vunpack.c.h.b16 %v144
    %v882 = vunpack.c.l.b16 %v145
    %v883 = vunpack.c.h.b16 %v145
    %v884 = vunpack.c.l.b16 %v146
    %v885 = vunpack.c.h.b16 %v146
    %v886 = vunpack.c.l.b16 %v147
    %v887 = vunpack.c.h.b16 %v147
    %v888 = vunpack.c.l.b16 %v148
    %v889 = vunpack.c.h.b16 %v148
    %v890 = vunpack.c.l.b16 %v149
    %v891 = vunpack.c.h.b16 %v149
    %v892 = vunpack.c.l.b16 %v150
    %v893 = vunpack.c.h.b16 %v150
    %v894 = vunpack.c.l.b16 %v151
    %v895 = vunpack.c.h.b16 %v151
    %v896 = vunpack.c.l.b16 %v152
    %v897 = vunpack.c.h.b16 %v152
    %v898 = vunpack.c.l.b16 %v153
    %v899 = vunpack.c.h.b16 %v153
    %v900 = vunpack.c.l.b16 %v154
    %v901 = vunpack.c.h.b16 %v154
    %v902 = vunpack.c.l.b16 %v155
    %v903 = vunpack.c.h.b16 %v155
    %v904 = vunpack.c.l.b16 %v156
    %v905 = vunpack.c.h.b16 %v156
    %v906 = vunpack.c.l.b16 %v157
    %v907 = vunpack.c.h.b16 %v157
    %v908 = vunpack.c.l.b16 %v158
    %v909 = vunpack.c.h.b16 %v158
    %v910 = vunpack.c.l.b16 %v159
    %v911 = vunpack.c.h.b16 %v159
    %v912 = vunpack.c.l.b16 %v160
    %v913 = vunpack.c.h.b16 %v160
    %v914 = vunpack.c.l.b16 %v161
    %v915 = vunpack.c.h.b16 %v161
    %v916 = vunpack.c.l.b16 %v162
    %v917 = vunpack.c.h.b16 %v162
    %v918 = vunpack.c.l.b16 %v163
    %v919 = vunpack.c.h.b16 %v163
    %v920 = vunpack.c.l.b16 %v164
    %v921 = vunpack.c.h.b16 %v164
    %v922 = vunpack.c.l.b16 %v165
    %v923 = vunpack.c.h.b16 %v165
    %v924 = vunpack.c.l.b16 %v166
    %v925 = vunpack.c.h.b16 %v166
    %v926 = vunpack.c.l.b16 %v167
    %v927 = vunpack.c.h.b16 %v167
    %v928 = vunpack.c.l.b16 %v168
    %v929 = vunpack.c.h.b16 %v168
    %v930 = vunpack.c.l.b16 %v169
    %v931 = vunpack.c.h.b16 %v169
    %v932 = vunpack.c.l.b16 %v170
    %v933 = vunpack.c.h.b16 %v170
    %v934 = vunpack.c.l.b16 %v171
    %v935 = vunpack.c.h.b16 %v171
    %v936 = vunpack.c.l.b16 %v172
    %v937 = vunpack.c.h.b16 %v172
    %v938 = vunpack.c.l.b16 %v173
    %v939 = vunpack.c.h.b16 %v173
    %v940 = vunpack.c.l.b16 %v174
    %v941 = vunpack.c.h.b16 %v174
    %v942 = vunpack.c.l.b16 %v175
    %v943 = vunpack.c.h.b16 %v175
    %v944 = vunpack.c.l.b16 %v176
    %v945 = vunpack.c.h.b16 %v176
    %v946 = vunpack.c.l.b16 %v177
    %v947 = vunpack.c.h.b16 %v177
    %v948 = vunpack.c.l.b16 %v178
    %v949 = vunpack.c.h.b16 %v178
    %v950 = vunpack.c.l.b16 %v179
    %v951 = vunpack.c.h.b16 %v179
    %v952 = vunpack.c.l.b16 %v180
    %v953 = vunpack.c.h.b16 %v180
    %v954 = vunpack.c.l.b16 %v181
    %v955 = vunpack.c.h.b16 %v181
    %v956 = vunpack.c.l.b16 %v182
    %v957 = vunpack.c.h.b16 %v182
    %v958 = vunpack.c.l.b16 %v183
    %v959 = vunpack.c.h.b16 %v183
    %v960 = vunpack.c.l.b16 %v184
    %v961 = vunpack.c.h.b16 %v184
    %v962 = vunpack.c.l.b16 %v185
    %v963 = vunpack.c.h.b16 %v185
    %v964 = vunpack.c.l.b16 %v186
    %v965 = vunpack.c.h.b16 %v186
    %v966 = vunpack.c.l.b16 %v187
    %v967 = vunpack.c.h.b16 %v187
    %v968 = vunpack.c.l.b16 %v188
    %v969 = vunpack.c.h.b16 %v188
    %v970 = vunpack.c.l.b16 %v189
    %v971 = vunpack.c.h.b16 %v189
    %v972 = vunpack.c.l.b16 %v190
    %v973 = vunpack.c.h.b16 %v190
    %v974 = vunpack.c.l.b16 %v191
    %v975 = vunpack.c.h.b16 %v191
    %v976 = vunpack.c.l.b16 %v192
    %v977 = vunpack.c.h.b16 %v192
    %v978 = vunpack.c.l.b16 %v193
    %v979 = vunpack.c.h.b16 %v193
    %v980 = vunpack.c.l.b16 %v194
    %v981 = vunpack.c.h.b16 %v194
    %v982 = vunpack.c.l.b16 %v195
    %v983 = vunpack.c.h.b16 %v195
    %v984 = vunpack.c.l.b16 %v196
    %v985 = vunpack.c.h.b16 %v196
    %v986 = vunpack.c.l.b16 %v197
    %v987 = vunpack.c.h.b16 %v197
    %v988 = vunpack.c.l.b16 %v198
    %v989 = vunpack.c.h.b16 %v198
    %v990 = vunpack.c.l.b16 %v199
    %v991 = vunpack.c.h.b16 %v199
    %v992 = vunpack.c.l.b16 %v200
    %v993 = vunpack.c.h.b16 %v200
    %v994 = vunpack.c.l.b16 %v201
    %v995 = vunpack.c.h.b16 %v201
    %v996 = vunpack.c.l.b16 %v202
    %v997 = vunpack.c.h.b16 %v202
    %v998 = vunpack.c.l.b16 %v203
    %v999 = vunpack.c.h.b16 %v203
    %v1000 = vunpack.c.l.b16 %v204
    %v1001 = vunpack.c.h.b16 %v204
    %v1002 = vunpack.c.l.b16 %v205
    %v1003 = vunpack.c.h.b16 %v205
    %v1004 = vunpack.c.l.b16 %v206
    %v1005 = vunpack.c.h.b16 %v206
    %v1006 = vunpack.c.l.b16 %v207
    %v1007 = vunpack.c.h.b16 %v207
    %v1008 = vunpack.c.l.b16 %v208
    %v1009 = vunpack.c.h.b16 %v208
    %v1010 = vunpack.c.l.b16 %v209
    %v1011 = vunpack.c.h.b16 %v209
    %v1012 = vunpack.c.l.b16 %v210
    %v1013 = vunpack.c.h.b16 %v210
    %v1014 = vunpack.c.l.b16 %v211
    %v1015 = vunpack.c.h.b16 %v211
    %v1016 = vunpack.c.l.b16 %v212
    %v1017 = vunpack.c.h.b16 %v212
    %v1018 = vunpack.c.l.b16 %v213
    %v1019 = vunpack.c.h.b16 %v213
    %v1020 = vunpack.c.l.b16 %v214
    %v1021 = vunpack.c.h.b16 %v214
    %v1022 = vunpack.c.l.b16 %v215
    %v1023 = vunpack.c.h.b16 %v215
    %v1024 = vunpack.c.l.b16 %v216
    %v1025 = vunpack.c.h.b16 %v216
    %v1026 = vunpack.c.l.b16 %v217
    %v1027 = vunpack.c.h.b16 %v217
    %v1028 = vunpack.c.l.b16 %v218
    %v1029 = vunpack.c.h.b16 %v218
    %v1030 = vunpack.c.l.b16 %v219
    %v1031 = vunpack.c.h.b16 %v219
    %v1032 = vunpack.c.l.b16 %v220
    %v1033 = vunpack.c.h.b16 %v220
    %v1034 = vunpack.c.l.b16 %v221
    %v1035 = vunpack.c.h.b16 %v221
    %v1036 = vunpack.c.l.b16 %v222
    %v1037 = vunpack.c.h.b16 %v222
    %v1038 = vunpack.c.l.b16 %v223
    %v1039 = vunpack.c.h.b16 %v223
    %v1040 = vunpack.c.l.b16 %v224
    %v1041 = vunpack.c.h.b16 %v224
    %v1042 = vunpack.c.l.b16 %v225
    %v1043 = vunpack.c.h.b16 %v225
    %v1044 = vunpack.c.l.b16 %v226
    %v1045 = vunpack.c.h.b16 %v226
    %v1046 = vunpack.c.l.b16 %v227
    %v1047 = vunpack.c.h.b16 %v227
    %v1048 = vunpack.c.l.b16 %v228
    %v1049 = vunpack.c.h.b16 %v228
    %v1050 = vunpack.c.l.b16 %v229
    %v1051 = vunpack.c.h.b16 %v229
    %v1052 = vunpack.c.l.b16 %v230
    %v1053 = vunpack.c.h.b16 %v230
    %v1054 = vunpack.c.l.b16 %v231
    %v1055 = vunpack.c.h.b16 %v231
    %v1056 = vunpack.c.l.b16 %v232
    %v1057 = vunpack.c.h.b16 %v232
    %v1058 = vunpack.c.l.b16 %v233
    %v1059 = vunpack.c.h.b16 %v233
    %v1060 = vunpack.c.l.b16 %v234
    %v1061 = vunpack.c.h.b16 %v234
    %v1062 = vunpack.c.l.b16 %v235
    %v1063 = vunpack.c.h.b16 %v235
    %v1064 = vunpack.c.l.b16 %v236
    %v1065 = vunpack.c.h.b16 %v236
    %v1066 = vunpack.c.l.b16 %v237
    %v1067 = vunpack.c.h.b16 %v237
    %v1068 = vunpack.c.l.b16 %v238
    %v1069 = vunpack.c.h.b16 %v238
    %v1070 = vunpack.c.l.b16 %v239
    %v1071 = vunpack.c.h.b16 %v239
    %v1072 = vunpack.c.l.b16 %v240
    %v1073 = vunpack.c.h.b16 %v240
    %v1074 = vunpack.c.l.b16 %v241
    %v1075 = vunpack.c.h.b16 %v241
    %v1076 = vunpack.c.l.b16 %v242
    %v1077 = vunpack.c.h.b16 %v242
    %v1078 = vunpack.c.l.b16 %v243
    %v1079 = vunpack.c.h.b16 %v243
    %v1080 = vunpack.c.l.b16 %v244
    %v1081 = vunpack.c.h.b16 %v244
    %v1082 = vunpack.c.l.b16 %v245
    %v1083 = vunpack.c.h.b16 %v245
    %v1084 = vunpack.c.l.b16 %v246
    %v1085 = vunpack.c.h.b16 %v246
    %v1086 = vunpack.c.l.b16 %v247
    %v1087 = vunpack.c.h.b16 %v247
    %v1088 = vunpack.c.l.b16 %v248
    %v1089 = vunpack.c.h.b16 %v248
    %v1090 = vunpack.c.l.b16 %v249
    %v1091 = vunpack.c.h.b16 %v249
    %v1092 = vunpack.c.l.b16 %v250
    %v1093 = vunpack.c.h.b16 %v250
    %v1094 = vunpack.c.l.b16 %v251
    %v1095 = vunpack.c.h.b16 %v251
    %v1096 = vunpack.c.l.b16 %v252
    %v1097 = vunpack.c.h.b16 %v252
    %v1098 = vunpack.c.l.b16 %v253
    %v1099 = vunpack.c.h.b16 %v253
    %v1100 = vunpack.c.l.b16 %v254
    %v1101 = vunpack.c.h.b16 %v254
    %v1102 = vunpack.c.l.b16 %v255
    %v1103 = vunpack.c.h.b16 %v255
    %v1104 = vunpack.c.l.b16 %v256
    %v1105 = vunpack.c.h.b16 %v256
    %v1106 = vunpack.c.l.b16 %v257
    %v1107 = vunpack.c.h.b16 %v257
    %v1108 = vunpack.c.l.b16 %v258
    %v1109 = vunpack.c.h.b16 %v258
    %v1110 = vunpack.c.l.b16 %v259
    %v1111 = vunpack.c.h.b16 %v259
    %v1112 = vunpack.c.l.b16 %v260
    %v1113 = vunpack.c.h.b16 %v260
    %v1114 = vunpack.c.l.b16 %v261
    %v1115 = vunpack.c.h.b16 %v261
    %v1116 = vunpack.c.l.b16 %v262
    %v1117 = vunpack.c.h.b16 %v262
    %v1118 = vunpack.c.l.b16 %v263
    %v1119 = vunpack.c.h.b16 %v263
    %v1120 = vunpack.c.l.b16 %v264
    %v1121 = vunpack.c.h.b16 %v264
    %v1122 = vunpack.c.l.b16 %v265
    %v1123 = vunpack.c.h.b16 %v265
    %v1124 = vunpack.c.l.b16 %v266
    %v1125 = vunpack.c.h.b16 %v266
    %v1126 = vunpack.c.l.b16 %v267
    %v1127 = vunpack.c.h.b16 %v267
    %v1128 = vunpack.c.l.b16 %v268
    %v1129 = vunpack.c.h.b16 %v268
    %v1130 = vunpack.c.l.b16 %v269
    %v1131 = vunpack.c.h.b16 %v269
    %v1132 = vunpack.c.l.b16 %v270
    %v1133 = vunpack.c.h.b16 %v270
    %v1134 = vunpack.c.l.b16 %v271
    %v1135 = vunpack.c.h.b16 %v271
    %v1136 = vunpack.c.l.b16 %v272
    %v1137 = vunpack.c.h.b16 %v272
    %v1138 = vunpack.c.l.b16 %v273
    %v1139 = vunpack.c.h.b16 %v273
    %v1140 = vunpack.c.l.b16 %v274
    %v1141 = vunpack.c.h.b16 %v274
    %v1142 = vunpack.c.l.b16 %v275
    %v1143 = vunpack.c.h.b16 %v275
    %v1144 = vunpack.c.l.b16 %v276
    %v1145 = vunpack.c.h.b16 %v276
    %v1146 = vunpack.c.l.b16 %v277
    %v1147 = vunpack.c.h.b16 %v277
    %v1148 = vunpack.c.l.b16 %v278
    %v1149 = vunpack.c.h.b16 %v278
    %v1150 = vunpack.c.l.b16 %v279
    %v1151 = vunpack.c.h.b16 %v279
    %v1152 = vunpack.c.l.b16 %v280
    %v1153 = vunpack.c.h.b16 %v280
    %v1154 = vunpack.c.l.b16 %v281
    %v1155 = vunpack.c.h.b16 %v281
    %v1156 = vunpack.c.l.b16 %v282
    %v1157 = vunpack.c.h.b16 %v282
    %v1158 = vunpack.c.l.b16 %v283
    %v1159 = vunpack.c.h.b16 %v283
    %v1160 = vunpack.c.l.b16 %v284
    %v1161 = vunpack.c.h.b16 %v284
    %v1162 = vunpack.c.l.b16 %v285
    %v1163 = vunpack.c.h.b16 %v285
    %v1164 = vunpack.c.l.b16 %v286
    %v1165 = vunpack.c.h.b16 %v286
    %v1166 = vunpack.c.l.b16 %v287
    %v1167 = vunpack.c.h.b16 %v287
    %v1168 = vunpack.c.l.b16 %v288
    %v1169 = vunpack.c.h.b16 %v288
    %v1170 = vunpack.c.l.b16 %v289
    %v1171 = vunpack.c.h.b16 %v289
    %v1172 = vunpack.c.l.b16 %v290
    %v1173 = vunpack.c.h.b16 %v290
    %v1174 = vunpack.c.l.b16 %v291
    %v1175 = vunpack.c.h.b16 %v291
    %v1176 = vunpack.c.l.b16 %v292
    %v1177 = vunpack.c.h.b16 %v292
    %v1178 = vunpack.c.l.b16 %v293
    %v1179 = vunpack.c.h.b16 %v293
    %v1180 = vunpack.c.l.b16 %v294
    %v1181 = vunpack.c.h.b16 %v294
    %v1182 = vunpack.c.l.b16 %v295
    %v1183 = vunpack.c.h.b16 %v295
    %v1184 = vunpack.c.l.b16 %v296
    %v1185 = vunpack.c.h.b16 %v296
    %v1186 = vunpack.c.l.b16 %v297
    %v1187 = vunpack.c.h.b16 %v297
    %v1188 = vunpack.c.l.b16 %v298
    %v1189 = vunpack.c.h.b16 %v298
    %v1190 = vunpack.c.l.b16 %v299
    %v1191 = vunpack.c.h.b16 %v299
    %v1192 = vunpack.c.l.b16 %v300
    %v1193 = vunpack.c.h.b16 %v300
    %v1194 = vunpack.c.l.b16 %v301
    %v1195 = vunpack.c.h.b16 %v301
    %v1196 = vunpack.c.l.b16 %v302
    %v1197 = vunpack.c.h.b16 %v302
    %v1198 = vunpack.c.l.b16 %v303
    %v1199 = vunpack.c.h.b16 %v303
    %v1200 = vunpack.c.l.b16 %v304
    %v1201 = vunpack.c.h.b16 %v304
    %v1202 = vunpack.c.l.b16 %v305
    %v1203 = vunpack.c.h.b16 %v305
    %v1204 = vunpack.c.l.b16 %v306
    %v1205 = vunpack.c.h.b16 %v306
    %v1206 = vunpack.c.l.b16 %v307
    %v1207 = vunpack.c.h.b16 %v307
    %v1208 = vunpack.c.l.b16 %v308
    %v1209 = vunpack.c.h.b16 %v308
    %v1210 = vunpack.c.l.b16 %v309
    %v1211 = vunpack.c.h.b16 %v309
    %v1212 = vunpack.c.l.b16 %v310
    %v1213 = vunpack.c.h.b16 %v310
    %v1214 = vunpack.c.l.b16 %v311
    %v1215 = vunpack.c.h.b16 %v311
    %v1216 = vunpack.c.l.b16 %v312
    %v1217 = vunpack.c.h.b16 %v312
    %v1218 = vunpack.c.l.b16 %v313
    %v1219 = vunpack.c.h.b16 %v313
    %v1220 = vunpack.c.l.b16 %v314
    %v1221 = vunpack.c.h.b16 %v314
    %v1222 = vunpack.c.l.b16 %v315
    %v1223 = vunpack.c.h.b16 %v315
    %v1224 = vunpack.c.l.b16 %v316
    %v1225 = vunpack.c.h.b16 %v316
    %v1226 = vunpack.c.l.b16 %v317
    %v1227 = vunpack.c.h.b16 %v317
    %v1228 = vunpack.c.l.b16 %v318
    %v1229 = vunpack.c.h.b16 %v318
    %v1230 = vunpack.c.l.b16 %v319
    %v1231 = vunpack.c.h.b16 %v319
    %v1232 = vunpack.c.l.b16 %v320
    %v1233 = vunpack.c.h.b16 %v320
    %v1234 = vunpack.c.l.b16 %v321
    %v1235 = vunpack.c.h.b16 %v321
    %v1236 = vunpack.c.l.b16 %v322
    %v1237 = vunpack.c.h.b16 %v322
    %v1238 = vunpack.c.l.b16 %v323
    %v1239 = vunpack.c.h.b16 %v323
    %v1240 = vunpack.c.l.b16 %v324
    %v1241 = vunpack.c.h.b16 %v324
    %v1242 = vunpack.c.l.b16 %v325
    %v1243 = vunpack.c.h.b16 %v325
    %v1244 = vunpack.c.l.b16 %v326
    %v1245 = vunpack.c.h.b16 %v326
    %v1246 = vunpack.c.l.b16 %v327
    %v1247 = vunpack.c.h.b16 %v327
    %v1248 = vunpack.c.l.b16 %v328
    %v1249 = vunpack.c.h.b16 %v328
    %v1250 = vunpack.c.l.b16 %v329
    %v1251 = vunpack.c.h.b16 %v329
    %v1252 = vunpack.c.l.b16 %v330
    %v1253 = vunpack.c.h.b16 %v330
    %v1254 = vunpack.c.l.b16 %v331
    %v1255 = vunpack.c.h.b16 %v331
    %v1256 = vpack.c.b16 %v748, %v744
    %v1257 = vpack.c.b16 %v749, %v745
    %v1258 = vpack.c.b16 %v750, %v746
    %v1259 = vpack.c.b16 %v751, %v747
    %v1260 = vpack.c.b16 %v756, %v752
    %v1261 = vpack.c.b16 %v757, %v753
    %v1262 = vpack.c.b16 %v758, %v754
    %v1263 = vpack.c.b16 %v759, %v755
    %v1264 = vpack.c.b16 %v764, %v760
    %v1265 = vpack.c.b16 %v765, %v761
    %v1266 = vpack.c.b16 %v766, %v762
    %v1267 = vpack.c.b16 %v767, %v763
    %v1268 = vpack.c.b16 %v772, %v768
    %v1269 = vpack.c.b16 %v773, %v769
    %v1270 = vpack.c.b16 %v774, %v770
    %v1271 = vpack.c.b16 %v775, %v771
    %v1272 = vpack.c.b16 %v780, %v776
    %v1273 = vpack.c.b16 %v781, %v777
    %v1274 = vpack.c.b16 %v782, %v778
    %v1275 = vpack.c.b16 %v783, %v779
    %v1276 = vpack.c.b16 %v788, %v784
    %v1277 = vpack.c.b16 %v789, %v785
    %v1278 = vpack.c.b16 %v790, %v786
    %v1279 = vpack.c.b16 %v791, %v787
    %v1280 = vpack.c.b16 %v796, %v792
    %v1281 = vpack.c.b16 %v797, %v793
    %v1282 = vpack.c.b16 %v798, %v794
    %v1283 = vpack.c.b16 %v799, %v795
    %v1284 = vpack.c.b16 %v804, %v800
    %v1285 = vpack.c.b16 %v805, %v801
    %v1286 = vpack.c.b16 %v806, %v802
    %v1287 = vpack.c.b16 %v807, %v803
    %v1288 = vpack.c.b16 %v812, %v808
    %v1289 = vpack.c.b16 %v813, %v809
    %v1290 = vpack.c.b16 %v814, %v810
    %v1291 = vpack.c.b16 %v815, %v811
    %v1292 = vpack.c.b16 %v820, %v816
    %v1293 = vpack.c.b16 %v821, %v817
    %v1294 = vpack.c.b16 %v822, %v818
    %v1295 = vpack.c.b16 %v823, %v819
    %v1296 = vpack.c.b16 %v828, %v824
    %v1297 = vpack.c.b16 %v829, %v825
    %v1298 = vpack.c.b16 %v830, %v826
    %v1299 = vpack.c.b16 %v831, %v827
    %v1300 = vpack.c.b16 %v836, %v832
    %v1301 = vpack.c.b16 %v837, %v833
    %v1302 = vpack.c.b16 %v838, %v834
    %v1303 = vpack.c.b16 %v839, %v835
    %v1304 = vpack.c.b16 %v844, %v840
    %v1305 = vpack.c.b16 %v845, %v841
    %v1306 = vpack.c.b16 %v846, %v842
    %v1307 = vpack.c.b16 %v847, %v843
    %v1308 = vpack.c.b16 %v852, %v848
    %v1309 = vpack.c.b16 %v853, %v849
    %v1310 = vpack.c.b16 %v854, %v850
    %v1311 = vpack.c.b16 %v855, %v851
    %v1312 = vpack.c.b16 %v860, %v856
    %v1313 = vpack.c.b16 %v861, %v857
    %v1314 = vpack.c.b16 %v862, %v858
    %v1315 = vpack.c.b16 %v863, %v859
    %v1316 = vpack.c.b16 %v868, %v864
    %v1317 = vpack.c.b16 %v869, %v865
    %v1318 = vpack.c.b16 %v870, %v866
    %v1319 = vpack.c.b16 %v871, %v867
    %v1320 = vpack.c.b16 %v876, %v872
    %v1321 = vpack.c.b16 %v877, %v873
    %v1322 = vpack.c.b16 %v878, %v874
    %v1323 = vpack.c.b16 %v879, %v875
    %v1324 = vpack.c.b16 %v884, %v880
    %v1325 = vpack.c.b16 %v885, %v881
    %v1326 = vpack.c.b16 %v886, %v882
    %v1327 = vpack.c.b16 %v887, %v883
    %v1328 = vpack.c.b16 %v892, %v888
    %v1329 = vpack.c.b16 %v893, %v889
    %v1330 = vpack.c.b16 %v894, %v890
    %v1331 = vpack.c.b16 %v895, %v891
    %v1332 = vpack.c.b16 %v900, %v896
    %v1333 = vpack.c.b16 %v901, %v897
    %v1334 = vpack.c.b16 %v902, %v898
    %v1335 = vpack.c.b16 %v903, %v899
    %v1336 = vpack.c.b16 %v908, %v904
    %v1337 = vpack.c.b16 %v909, %v905
    %v1338 = vpack.c.b16 %v910, %v906
    %v1339 = vpack.c.b16 %v911, %v907
    %v1340 = vpack.c.b16 %v916, %v912
    %v1341 = vpack.c.b16 %v917, %v913
    %v1342 = vpack.c.b16 %v918, %v914
    %v1343 = vpack.c.b16 %v919, %v915
    %v1344 = vpack.c.b16 %v924, %v920
    %v1345 = vpack.c.b16 %v925, %v921
    %v1346 = vpack.c.b16 %v926, %v922
    %v1347 = vpack.c.b16 %v927, %v923
    %v1348 = vpack.c.b16 %v932, %v928
    %v1349 = vpack.c.b16 %v933, %v929
    %v1350 = vpack.c.b16 %v934, %v930
    %v1351 = vpack.c.b16 %v935, %v931
    %v1352 = vpack.c.b16 %v940, %v936
    %v1353 = vpack.c.b16 %v941, %v937
    %v1354 = vpack.c.b16 %v942, %v938
    %v1355 = vpack.c.b16 %v943, %v939
    %v1356 = vpack.c.b16 %v948, %v944
    %v1357 = vpack.c.b16 %v949, %v945
    %v1358 = vpack.c.b16 %v950, %v946
    %v1359 = vpack.c.b16 %v951, %v947
    %v1360 = vpack.c.b16 %v956, %v952
    %v1361 = vpack.c.b16 %v957, %v953
    %v1362 = vpack.c.b16 %v958, %v954
    %v1363 = vpack.c.b16 %v959, %v955
    %v1364 = vpack.c.b16 %v964, %v960
    %v1365 = vpack.c.b16 %v965, %v961
    %v1366 = vpack.c.b16 %v966, %v962
    %v1367 = vpack.c.b16 %v967, %v963
    %v1368 = vpack.c.b16 %v972, %v968
    %v1369 = vpack.c.b16 %v973, %v969
    %v1370 = vpack.c.b16 %v974, %v970
    %v1371 = vpack.c.b16 %v975, %v971
    %v1372 = vpack.c.b16 %v980, %v976
    %v1373 = vpack.c.b16 %v981, %v977
    %v1374 = vpack.c.b16 %v982, %v978
    %v1375 = vpack.c.b16 %v983, %v979
    %v1376 = vpack.c.b16 %v988, %v984
    %v1377 = vpack.c.b16 %v989, %v985
    %v1378 = vpack.c.b16 %v990, %v986
    %v1379 = vpack.c.b16 %v991, %v987
    %v1380 = vpack.c.b16 %v996, %v992
    %v1381 = vpack.c.b16 %v997, %v993
    %v1382 = vpack.c.b16 %v998, %v994
    %v1383 = vpack.c.b16 %v999, %v995
    %v1384 = vpack.c.b16 %v1004, %v1000
    %v1385 = vpack.c.b16 %v1005, %v1001
    %v1386 = vpack.c.b16 %v1006, %v1002
    %v1387 = vpack.c.b16 %v1007, %v1003
    %v1388 = vpack.c.b16 %v1012, %v1008
    %v1389 = vpack.c.b16 %v1013, %v1009
    %v1390 = vpack.c.b16 %v1014, %v1010
    %v1391 = vpack.c.b16 %v1015, %v1011
    %v1392 = vpack.c.b16 %v1020, %v1016
    %v1393 = vpack.c.b16 %v1021, %v1017
    %v1394 = vpack.c.b16 %v1022, %v1018
    %v1395 = vpack.c.b16 %v1023, %v1019
    %v1396 = vpack.c.b16 %v1028, %v1024
    %v1397 = vpack.c.b16 %v1029, %v1025
    %v1398 = vpack.c.b16 %v1030, %v1026
    %v1399 = vpack.c.b16 %v1031, %v1027
    %v1400 = vpack.c.b16 %v1036, %v1032
    %v1401 = vpack.c.b16 %v1037, %v1033
    %v1402 = vpack.c.b16 %v1038, %v1034
    %v1403 = vpack.c.b16 %v1039, %v1035
    %v1404 = vpack.c.b16 %v1044, %v1040
    %v1405 = vpack.c.b16 %v1045, %v1041
    %v1406 = vpack.c.b16 %v1046, %v1042
    %v1407 = vpack.c.b16 %v1047, %v1043
    %v1408 = vpack.c.b16 %v1052, %v1048
    %v1409 = vpack.c.b16 %v1053, %v1049
    %v1410 = vpack.c.b16 %v1054, %v1050
    %v1411 = vpack.c.b16 %v1055, %v1051
    %v1412 = vpack.c.b16 %v1060, %v1056
    %v1413 = vpack.c.b16 %v1061, %v1057
    %v1414 = vpack.c.b16 %v1062, %v1058
    %v1415 = vpack.c.b16 %v1063, %v1059
    %v1416 = vpack.c.b16 %v1068, %v1064
    %v1417 = vpack.c.b16 %v1069, %v1065
    %v1418 = vpack.c.b16 %v1070, %v1066
    %v1419 = vpack.c.b16 %v1071, %v1067
    %v1420 = vpack.c.b16 %v1076, %v1072
    %v1421 = vpack.c.b16 %v1077, %v1073
    %v1422 = vpack.c.b16 %v1078, %v1074
    %v1423 = vpack.c.b16 %v1079, %v1075
    %v1424 = vpack.c.b16 %v1084, %v1080
    %v1425 = vpack.c.b16 %v1085, %v1081
    %v1426 = vpack.c.b16 %v1086, %v1082
    %v1427 = vpack.c.b16 %v1087, %v1083
    %v1428 = vpack.c.b16 %v1092, %v1088
    %v1429 = vpack.c.b16 %v1093, %v1089
    %v1430 = vpack.c.b16 %v1094, %v1090
    %v1431 = vpack.c.b16 %v1095, %v1091
    %v1432 = vpack.c.b16 %v1100, %v1096
    %v1433 = vpack.c.b16 %v1101, %v1097
    %v1434 = vpack.c.b16 %v1102, %v1098
    %v1435 = vpack.c.b16 %v1103, %v1099
    %v1436 = vpack.c.b16 %v1108, %v1104
    %v1437 = vpack.c.b16 %v1109, %v1105
    %v1438 = vpack.c.b16 %v1110, %v1106
    %v1439 = vpack.c.b16 %v1111, %v1107
    %v1440 = vpack.c.b16 %v1116, %v1112
    %v1441 = vpack.c.b16 %v1117, %v1113
    %v1442 = vpack.c.b16 %v1118, %v1114
    %v1443 = vpack.c.b16 %v1119, %v1115
    %v1444 = vpack.c.b16 %v1124, %v1120
    %v1445 = vpack.c.b16 %v1125, %v1121
    %v1446 = vpack.c.b16 %v1126, %v1122
    %v1447 = vpack.c.b16 %v1127, %v1123
    %v1448 = vpack.c.b16 %v1132, %v1128
    %v1449 = vpack.c.b16 %v1133, %v1129
    %v1450 = vpack.c.b16 %v1134, %v1130
    %v1451 = vpack.c.b16 %v1135, %v1131
    %v1452 = vpack.c.b16 %v1140, %v1136
    %v1453 = vpack.c.b16 %v1141, %v1137
    %v1454 = vpack.c.b16 %v1142, %v1138
    %v1455 = vpack.c.b16 %v1143, %v1139
    %v1456 = vpack.c.b16 %v1148, %v1144
    %v1457 = vpack.c.b16 %v1149, %v1145
    %v1458 = vpack.c.b16 %v1150, %v1146
    %v1459 = vpack.c.b16 %v1151, %v1147
    %v1460 = vpack.c.b16 %v1156, %v1152
    %v1461 = vpack.c.b16 %v1157, %v1153
    %v1462 = vpack.c.b16 %v1158, %v1154
    %v1463 = vpack.c.b16 %v1159, %v1155
    %v1464 = vpack.c.b16 %v1164, %v1160
    %v1465 = vpack.c.b16 %v1165, %v1161
    %v1466 = vpack.c.b16 %v1166, %v1162
    %v1467 = vpack.c.b16 %v1167, %v1163
    %v1468 = vpack.c.b16 %v1172, %v1168
    %v1469 = vpack.c.b16 %v1173, %v1169
    %v1470 = vpack.c.b16 %v1174, %v1170
    %v1471 = vpack.c.b16 %v1175, %v1171
    %v1472 = vpack.c.b16 %v1180, %v1176
    %v1473 = vpack.c.b16 %v1181, %v1177
    %v1474 = vpack.c.b16 %v1182, %v1178
    %v1475 = vpack.c.b16 %v1183, %v1179
    %v1476 = vpack.c.b16 %v1188, %v1184
    %v1477 = vpack.c.b16 %v1189, %v1185
    %v1478 = vpack.c.b16 %v1190, %v1186
    %v1479 = vpack.c.b16 %v1191, %v1187
    %v1480 = vpack.c.b16 %v1196, %v1192
    %v1481 = vpack.c.b16 %v1197, %v1193
    %v1482 = vpack.c.b16 %v1198, %v1194
    %v1483 = vpack.c.b16 %v1199, %v1195
    %v1484 = vpack.c.b16 %v1204, %v1200
    %v1485 = vpack.c.b16 %v1205, %v1201
    %v1486 = vpack.c.b16 %v1206, %v1202
    %v1487 = vpack.c.b16 %v1207, %v1203
    %v1488 = vpack.c.b16 %v1212, %v1208
    %v1489 = vpack.c.b16 %v1213, %v1209
    %v1490 = vpack.c.b16 %v1214, %v1210
    %v1491 = vpack.c.b16 %v1215, %v1211
    %v1492 = vpack.c.b16 %v1220, %v1216
    %v1493 = vpack.c.b16 %v1221, %v1217
    %v1494 = vpack.c.b16 %v1222, %v1218
    %v1495 = vpack.c.b16 %v1223, %v1219
    %v1496 = vpack.c.b16 %v1228, %v1224
    %v1497 = vpack.c.b16 %v1229, %v1225
    %v1498 = vpack.c.b16 %v1230, %v1226
    %v1499 = vpack.c.b16 %v1231, %v1227
    %v1500 = vpack.c.b16 %v1236, %v1232
    %v1501 = vpack.c.b16 %v1237, %v1233
    %v1502 = vpack.c.b16 %v1238, %v1234
    %v1503 = vpack.c.b16 %v1239, %v1235
    %v1504 = vpack.c.b16 %v1244, %v1240
    %v1505 = vpack.c.b16 %v1245, %v1241
    %v1506 = vpack.c.b16 %v1246, %v1242
    %v1507 = vpack.c.b16 %v1247, %v1243
    %v1508 = vpack.c.b16 %v1252, %v1248
    %v1509 = vpack.c.b16 %v1253, %v1249
    %v1510 = vpack.c.b16 %v1254, %v1250
    %v1511 = vpack.c.b16 %v1255, %v1251
    %1768 = vmatprep.subr.bf16.mxu0 %v1285
    %1769 = vmatpush1.bf16.msra.mxu0 %v1284
    %1770 = vmatprep.subr.bf16.mxu0 %v1281
    %1771 = vmatpush1.bf16.msra.mxu0 %v1280
    %1772 = vmatprep.subr.bf16.mxu0 %v1277
    %1773 = vmatpush1.bf16.msra.mxu0 %v1276
    %1774 = vmatprep.subr.bf16.mxu0 %v1273
    %1775 = vmatpush1.bf16.msra.mxu0 %v1272
    %1776 = vmatprep.subr.bf16.mxu0 %v1269
    %1777 = vmatpush1.bf16.msra.mxu0 %v1268
    %1778 = vmatprep.subr.bf16.mxu0 %v1265
    %1779 = vmatpush1.bf16.msra.mxu0 %v1264
    %1780 = vmatprep.subr.bf16.mxu0 %v1261
    %1781 = vmatpush1.bf16.msra.mxu0 %v1260
    %1782 = vmatprep.subr.bf16.mxu0 %v1257
    %1783 = vmatpush1.bf16.msra.mxu0 %v1256
    %1784 = vmatprep.subr.bf16.mxu0 %v1317
    %1785 = vmatpush2.bf16.msra.mxu0 %v1316
    %1786 = vmatprep.subr.bf16.mxu0 %v1313
    %1787 = vmatpush2.bf16.msra.mxu0 %v1312
    %1788 = vmatprep.subr.bf16.mxu0 %v1309
    %1789 = vmatpush2.bf16.msra.mxu0 %v1308
    %1790 = vmatprep.subr.bf16.mxu0 %v1305
    %1791 = vmatpush2.bf16.msra.mxu0 %v1304
    %1792 = vmatprep.subr.bf16.mxu0 %v1301
    %1793 = vmatpush2.bf16.msra.mxu0 %v1300
    %1794 = vmatprep.subr.bf16.mxu0 %v1297
    %1795 = vmatpush2.bf16.msra.mxu0 %v1296
    %1796 = vmatprep.subr.bf16.mxu0 %v1293
    %1797 = vmatpush2.bf16.msra.mxu0 %v1292
    %1798 = vmatprep.subr.bf16.mxu0 %v1289
    %1799 = vmatpush2.bf16.msra.mxu0 %v1288
    %1800 = vmatprep.mubr.bf16.mxu0 %v473
    %1801 = vmatmul.mubr.bf16.gmra.mxu0 %v472
    %v1802 = vpop.f32.mrf.mxu0
    %v1803 = vadd.f32 0.0, %v1802
    %v1804 = vpop.f32.mrf.mxu0
    %v1805 = vadd.f32 0.0, %v1804
    %v1806 = vpop.f32.mrf.mxu0
    %v1807 = vpop.f32.mrf.mxu0
    %1808 = vdwg.mxu0
    %1809 = vmatprep.subr.bf16.mxu0 %v1349
    %1810 = vmatpush1.bf16.msra.mxu0 %v1348
    %1811 = vmatprep.subr.bf16.mxu0 %v1345
    %1812 = vmatpush1.bf16.msra.mxu0 %v1344
    %1813 = vmatprep.subr.bf16.mxu0 %v1341
    %1814 = vmatpush1.bf16.msra.mxu0 %v1340
    %1815 = vmatprep.subr.bf16.mxu0 %v1337
    %1816 = vmatpush1.bf16.msra.mxu0 %v1336
    %1817 = vmatprep.subr.bf16.mxu0 %v1333
    %1818 = vmatpush1.bf16.msra.mxu0 %v1332
    %1819 = vmatprep.subr.bf16.mxu0 %v1329
    %1820 = vmatpush1.bf16.msra.mxu0 %v1328
    %1821 = vmatprep.subr.bf16.mxu0 %v1325
    %1822 = vmatpush1.bf16.msra.mxu0 %v1324
    %1823 = vmatprep.subr.bf16.mxu0 %v1321
    %1824 = vmatpush1.bf16.msra.mxu0 %v1320
    %1825 = vmatprep.subr.bf16.mxu0 %v1381
    %1826 = vmatpush2.bf16.msra.mxu0 %v1380
    %1827 = vmatprep.subr.bf16.mxu0 %v1377
    %1828 = vmatpush2.bf16.msra.mxu0 %v1376
    %1829 = vmatprep.subr.bf16.mxu0 %v1373
    %1830 = vmatpush2.bf16.msra.mxu0 %v1372
    %1831 = vmatprep.subr.bf16.mxu0 %v1369
    %1832 = vmatpush2.bf16.msra.mxu0 %v1368
    %1833 = vmatprep.subr.bf16.mxu0 %v1365
    %1834 = vmatpush2.bf16.msra.mxu0 %v1364
    %1835 = vmatprep.subr.bf16.mxu0 %v1361
    %1836 = vmatpush2.bf16.msra.mxu0 %v1360
    %1837 = vmatprep.subr.bf16.mxu0 %v1357
    %1838 = vmatpush2.bf16.msra.mxu0 %v1356
    %1839 = vmatprep.subr.bf16.mxu0 %v1353
    %1840 = vmatpush2.bf16.msra.mxu0 %v1352
    %1841 = vmatprep.mubr.bf16.mxu0 %v475
    %1842 = vmatmul.mubr.bf16.gmra.mxu0 %v474
    %v1843 = vpop.f32.mrf.mxu0
    %v1844 = vadd.f32 %v1803, %v1843
    %v1845 = vpop.f32.mrf.mxu0
    %v1846 = vadd.f32 %v1805, %v1845
    %v1847 = vpop.f32.mrf.mxu0
    %v1848 = vpop.f32.mrf.mxu0
    %1849 = vdwg.mxu0
    %1850 = vmatprep.subr.bf16.mxu0 %v1413
    %1851 = vmatpush1.bf16.msra.mxu0 %v1412
    %1852 = vmatprep.subr.bf16.mxu0 %v1409
    %1853 = vmatpush1.bf16.msra.mxu0 %v1408
    %1854 = vmatprep.subr.bf16.mxu0 %v1405
    %1855 = vmatpush1.bf16.msra.mxu0 %v1404
    %1856 = vmatprep.subr.bf16.mxu0 %v1401
    %1857 = vmatpush1.bf16.msra.mxu0 %v1400
    %1858 = vmatprep.subr.bf16.mxu0 %v1397
    %1859 = vmatpush1.bf16.msra.mxu0 %v1396
    %1860 = vmatprep.subr.bf16.mxu0 %v1393
    %1861 = vmatpush1.bf16.msra.mxu0 %v1392
    %1862 = vmatprep.subr.bf16.mxu0 %v1389
    %1863 = vmatpush1.bf16.msra.mxu0 %v1388
    %1864 = vmatprep.subr.bf16.mxu0 %v1385
    %1865 = vmatpush1.bf16.msra.mxu0 %v1384
    %1866 = vmatprep.subr.bf16.mxu0 %v1445
    %1867 = vmatpush2.bf16.msra.mxu0 %v1444
    %1868 = vmatprep.subr.bf16.mxu0 %v1441
    %1869 = vmatpush2.bf16.msra.mxu0 %v1440
    %1870 = vmatprep.subr.bf16.mxu0 %v1437
    %1871 = vmatpush2.bf16.msra.mxu0 %v1436
    %1872 = vmatprep.subr.bf16.mxu0 %v1433
    %1873 = vmatpush2.bf16.msra.mxu0 %v1432
    %1874 = vmatprep.subr.bf16.mxu0 %v1429
    %1875 = vmatpush2.bf16.msra.mxu0 %v1428
    %1876 = vmatprep.subr.bf16.mxu0 %v1425
    %1877 = vmatpush2.bf16.msra.mxu0 %v1424
    %1878 = vmatprep.subr.bf16.mxu0 %v1421
    %1879 = vmatpush2.bf16.msra.mxu0 %v1420
    %1880 = vmatprep.subr.bf16.mxu0 %v1417
    %1881 = vmatpush2.bf16.msra.mxu0 %v1416
    %1882 = vmatprep.mubr.bf16.mxu0 %v477
    %1883 = vmatmul.mubr.bf16.gmra.mxu0 %v476
    %v1884 = vpop.f32.mrf.mxu0
    %v1885 = vadd.f32 %v1844, %v1884
    %v1886 = vpop.f32.mrf.mxu0
    %v1887 = vadd.f32 %v1846, %v1886
    %v1888 = vpop.f32.mrf.mxu0
    %v1889 = vpop.f32.mrf.mxu0
    %1890 = vdwg.mxu0
    %1891 = vmatprep.subr.bf16.mxu0 %v1477
    %1892 = vmatpush1.bf16.msra.mxu0 %v1476
    %1893 = vmatprep.subr.bf16.mxu0 %v1473
    %1894 = vmatpush1.bf16.msra.mxu0 %v1472
    %1895 = vmatprep.subr.bf16.mxu0 %v1469
    %1896 = vmatpush1.bf16.msra.mxu0 %v1468
    %1897 = vmatprep.subr.bf16.mxu0 %v1465
    %1898 = vmatpush1.bf16.msra.mxu0 %v1464
    %1899 = vmatprep.subr.bf16.mxu0 %v1461
    %1900 = vmatpush1.bf16.msra.mxu0 %v1460
    %1901 = vmatprep.subr.bf16.mxu0 %v1457
    %1902 = vmatpush1.bf16.msra.mxu0 %v1456
    %1903 = vmatprep.subr.bf16.mxu0 %v1453
    %1904 = vmatpush1.bf16.msra.mxu0 %v1452
    %1905 = vmatprep.subr.bf16.mxu0 %v1449
    %1906 = vmatpush1.bf16.msra.mxu0 %v1448
    %1907 = vmatprep.subr.bf16.mxu0 %v1509
    %1908 = vmatpush2.bf16.msra.mxu0 %v1508
    %1909 = vmatprep.subr.bf16.mxu0 %v1505
    %1910 = vmatpush2.bf16.msra.mxu0 %v1504
    %1911 = vmatprep.subr.bf16.mxu0 %v1501
    %1912 = vmatpush2.bf16.msra.mxu0 %v1500
    %1913 = vmatprep.subr.bf16.mxu0 %v1497
    %1914 = vmatpush2.bf16.msra.mxu0 %v1496
    %1915 = vmatprep.subr.bf16.mxu0 %v1493
    %1916 = vmatpush2.bf16.msra.mxu0 %v1492
    %1917 = vmatprep.subr.bf16.mxu0 %v1489
    %1918 = vmatpush2.bf16.msra.mxu0 %v1488
    %1919 = vmatprep.subr.bf16.mxu0 %v1485
    %1920 = vmatpush2.bf16.msra.mxu0 %v1484
    %1921 = vmatprep.subr.bf16.mxu0 %v1481
    %1922 = vmatpush2.bf16.msra.mxu0 %v1480
    %1923 = vmatprep.mubr.bf16.mxu0 %v479
    %1924 = vmatmul.mubr.bf16.gmra.mxu0 %v478
    %v1925 = vpop.f32.mrf.mxu0
    %v1926 = vadd.f32 %v1885, %v1925
    %v1927 = vpop.f32.mrf.mxu0
    %v1928 = vadd.f32 %v1887, %v1927
    %v1929 = vpop.f32.mrf.mxu0
    %v1930 = vpop.f32.mrf.mxu0
    %1931 = vdwg.mxu0
    %1932 = vmatprep.subr.bf16.mxu0 %v1287
    %1933 = vmatpush1.bf16.msra.mxu0 %v1286
    %1934 = vmatprep.subr.bf16.mxu0 %v1283
    %1935 = vmatpush1.bf16.msra.mxu0 %v1282
    %1936 = vmatprep.subr.bf16.mxu0 %v1279
    %1937 = vmatpush1.bf16.msra.mxu0 %v1278
    %1938 = vmatprep.subr.bf16.mxu0 %v1275
    %1939 = vmatpush1.bf16.msra.mxu0 %v1274
    %1940 = vmatprep.subr.bf16.mxu0 %v1271
    %1941 = vmatpush1.bf16.msra.mxu0 %v1270
    %1942 = vmatprep.subr.bf16.mxu0 %v1267
    %1943 = vmatpush1.bf16.msra.mxu0 %v1266
    %1944 = vmatprep.subr.bf16.mxu0 %v1263
    %1945 = vmatpush1.bf16.msra.mxu0 %v1262
    %1946 = vmatprep.subr.bf16.mxu0 %v1259
    %1947 = vmatpush1.bf16.msra.mxu0 %v1258
    %1948 = vmatprep.subr.bf16.mxu0 %v1319
    %1949 = vmatpush2.bf16.msra.mxu0 %v1318
    %1950 = vmatprep.subr.bf16.mxu0 %v1315
    %1951 = vmatpush2.bf16.msra.mxu0 %v1314
    %1952 = vmatprep.subr.bf16.mxu0 %v1311
    %1953 = vmatpush2.bf16.msra.mxu0 %v1310
    %1954 = vmatprep.subr.bf16.mxu0 %v1307
    %1955 = vmatpush2.bf16.msra.mxu0 %v1306
    %1956 = vmatprep.subr.bf16.mxu0 %v1303
    %1957 = vmatpush2.bf16.msra.mxu0 %v1302
    %1958 = vmatprep.subr.bf16.mxu0 %v1299
    %1959 = vmatpush2.bf16.msra.mxu0 %v1298
    %1960 = vmatprep.subr.bf16.mxu0 %v1295
    %1961 = vmatpush2.bf16.msra.mxu0 %v1294
    %1962 = vmatprep.subr.bf16.mxu0 %v1291
    %1963 = vmatpush2.bf16.msra.mxu0 %v1290
    %1964 = vmatprep.mubr.bf16.mxu0 %v473
    %1965 = vmatmul.mubr.bf16.gmra.mxu0 %v472
    %v1966 = vpop.f32.mrf.mxu0
    %v1967 = vadd.f32 0.0, %v1966
    %v1968 = vpop.f32.mrf.mxu0
    %v1969 = vadd.f32 0.0, %v1968
    %v1970 = vpop.f32.mrf.mxu0
    %v1971 = vpop.f32.mrf.mxu0
    %1972 = vdwg.mxu0
    %1973 = vmatprep.subr.bf16.mxu0 %v1351
    %1974 = vmatpush1.bf16.msra.mxu0 %v1350
    %1975 = vmatprep.subr.bf16.mxu0 %v1347
    %1976 = vmatpush1.bf16.msra.mxu0 %v1346
    %1977 = vmatprep.subr.bf16.mxu0 %v1343
    %1978 = vmatpush1.bf16.msra.mxu0 %v1342
    %1979 = vmatprep.subr.bf16.mxu0 %v1339
    %1980 = vmatpush1.bf16.msra.mxu0 %v1338
    %1981 = vmatprep.subr.bf16.mxu0 %v1335
    %1982 = vmatpush1.bf16.msra.mxu0 %v1334
    %1983 = vmatprep.subr.bf16.mxu0 %v1331
    %1984 = vmatpush1.bf16.msra.mxu0 %v1330
    %1985 = vmatprep.subr.bf16.mxu0 %v1327
    %1986 = vmatpush1.bf16.msra.mxu0 %v1326
    %1987 = vmatprep.subr.bf16.mxu0 %v1323
    %1988 = vmatpush1.bf16.msra.mxu0 %v1322
    %1989 = vmatprep.subr.bf16.mxu0 %v1383
    %1990 = vmatpush2.bf16.msra.mxu0 %v1382
    %1991 = vmatprep.subr.bf16.mxu0 %v1379
    %1992 = vmatpush2.bf16.msra.mxu0 %v1378
    %1993 = vmatprep.subr.bf16.mxu0 %v1375
    %1994 = vmatpush2.bf16.msra.mxu0 %v1374
    %1995 = vmatprep.subr.bf16.mxu0 %v1371
    %1996 = vmatpush2.bf16.msra.mxu0 %v1370
    %1997 = vmatprep.subr.bf16.mxu0 %v1367
    %1998 = vmatpush2.bf16.msra.mxu0 %v1366
    %1999 = vmatprep.subr.bf16.mxu0 %v1363
    %2000 = vmatpush2.bf16.msra.mxu0 %v1362
    %2001 = vmatprep.subr.bf16.mxu0 %v1359
    %2002 = vmatpush2.bf16.msra.mxu0 %v1358
    %2003 = vmatprep.subr.bf16.mxu0 %v1355
    %2004 = vmatpush2.bf16.msra.mxu0 %v1354
    %2005 = vmatprep.mubr.bf16.mxu0 %v475
    %2006 = vmatmul.mubr.bf16.gmra.mxu0 %v474
    %v2007 = vpop.f32.mrf.mxu0
    %v2008 = vadd.f32 %v1967, %v2007
    %v2009 = vpop.f32.mrf.mxu0
    %v2010 = vadd.f32 %v1969, %v2009
    %v2011 = vpop.f32.mrf.mxu0
    %v2012 = vpop.f32.mrf.mxu0
    %2013 = vdwg.mxu0
    %2014 = vmatprep.subr.bf16.mxu0 %v1415
    %2015 = vmatpush1.bf16.msra.mxu0 %v1414
    %2016 = vmatprep.subr.bf16.mxu0 %v1411
    %2017 = vmatpush1.bf16.msra.mxu0 %v1410
    %2018 = vmatprep.subr.bf16.mxu0 %v1407
    %2019 = vmatpush1.bf16.msra.mxu0 %v1406
    %2020 = vmatprep.subr.bf16.mxu0 %v1403
    %2021 = vmatpush1.bf16.msra.mxu0 %v1402
    %2022 = vmatprep.subr.bf16.mxu0 %v1399
    %2023 = vmatpush1.bf16.msra.mxu0 %v1398
    %2024 = vmatprep.subr.bf16.mxu0 %v1395
    %2025 = vmatpush1.bf16.msra.mxu0 %v1394
    %2026 = vmatprep.subr.bf16.mxu0 %v1391
    %2027 = vmatpush1.bf16.msra.mxu0 %v1390
    %2028 = vmatprep.subr.bf16.mxu0 %v1387
    %2029 = vmatpush1.bf16.msra.mxu0 %v1386
    %2030 = vmatprep.subr.bf16.mxu0 %v1447
    %2031 = vmatpush2.bf16.msra.mxu0 %v1446
    %2032 = vmatprep.subr.bf16.mxu0 %v1443
    %2033 = vmatpush2.bf16.msra.mxu0 %v1442
    %2034 = vmatprep.subr.bf16.mxu0 %v1439
    %2035 = vmatpush2.bf16.msra.mxu0 %v1438
    %2036 = vmatprep.subr.bf16.mxu0 %v1435
    %2037 = vmatpush2.bf16.msra.mxu0 %v1434
    %2038 = vmatprep.subr.bf16.mxu0 %v1431
    %2039 = vmatpush2.bf16.msra.mxu0 %v1430
    %2040 = vmatprep.subr.bf16.mxu0 %v1427
    %2041 = vmatpush2.bf16.msra.mxu0 %v1426
    %2042 = vmatprep.subr.bf16.mxu0 %v1423
    %2043 = vmatpush2.bf16.msra.mxu0 %v1422
    %2044 = vmatprep.subr.bf16.mxu0 %v1419
    %2045 = vmatpush2.bf16.msra.mxu0 %v1418
    %2046 = vmatprep.mubr.bf16.mxu0 %v477
    %2047 = vmatmul.mubr.bf16.gmra.mxu0 %v476
    %v2048 = vpop.f32.mrf.mxu0
    %v2049 = vadd.f32 %v2008, %v2048
    %v2050 = vpop.f32.mrf.mxu0
    %v2051 = vadd.f32 %v2010, %v2050
    %v2052 = vpop.f32.mrf.mxu0
    %v2053 = vpop.f32.mrf.mxu0
    %2054 = vdwg.mxu0
    %2055 = vmatprep.subr.bf16.mxu0 %v1479
    %2056 = vmatpush1.bf16.msra.mxu0 %v1478
    %2057 = vmatprep.subr.bf16.mxu0 %v1475
    %2058 = vmatpush1.bf16.msra.mxu0 %v1474
    %2059 = vmatprep.subr.bf16.mxu0 %v1471
    %2060 = vmatpush1.bf16.msra.mxu0 %v1470
    %2061 = vmatprep.subr.bf16.mxu0 %v1467
    %2062 = vmatpush1.bf16.msra.mxu0 %v1466
    %2063 = vmatprep.subr.bf16.mxu0 %v1463
    %2064 = vmatpush1.bf16.msra.mxu0 %v1462
    %2065 = vmatprep.subr.bf16.mxu0 %v1459
    %2066 = vmatpush1.bf16.msra.mxu0 %v1458
    %2067 = vmatprep.subr.bf16.mxu0 %v1455
    %2068 = vmatpush1.bf16.msra.mxu0 %v1454
    %2069 = vmatprep.subr.bf16.mxu0 %v1451
    %2070 = vmatpush1.bf16.msra.mxu0 %v1450
    %2071 = vmatprep.subr.bf16.mxu0 %v1511
    %2072 = vmatpush2.bf16.msra.mxu0 %v1510
    %2073 = vmatprep.subr.bf16.mxu0 %v1507
    %2074 = vmatpush2.bf16.msra.mxu0 %v1506
    %2075 = vmatprep.subr.bf16.mxu0 %v1503
    %2076 = vmatpush2.bf16.msra.mxu0 %v1502
    %2077 = vmatprep.subr.bf16.mxu0 %v1499
    %2078 = vmatpush2.bf16.msra.mxu0 %v1498
    %2079 = vmatprep.subr.bf16.mxu0 %v1495
    %2080 = vmatpush2.bf16.msra.mxu0 %v1494
    %2081 = vmatprep.subr.bf16.mxu0 %v1491
    %2082 = vmatpush2.bf16.msra.mxu0 %v1490
    %2083 = vmatprep.subr.bf16.mxu0 %v1487
    %2084 = vmatpush2.bf16.msra.mxu0 %v1486
    %2085 = vmatprep.subr.bf16.mxu0 %v1483
    %2086 = vmatpush2.bf16.msra.mxu0 %v1482
    %2087 = vmatprep.mubr.bf16.mxu0 %v479
    %2088 = vmatmul.mubr.bf16.gmra.mxu0 %v478
    %v2089 = vpop.f32.mrf.mxu0
    %v2090 = vadd.f32 %v2049, %v2089
    %v2091 = vpop.f32.mrf.mxu0
    %v2092 = vadd.f32 %v2051, %v2091
    %v2093 = vpop.f32.mrf.mxu0
    %v2094 = vpop.f32.mrf.mxu0
    %2095 = vdwg.mxu0
    %v2096 = vmul.f32 %v1926, %v1926
    %v2097 = vmul.f32 %v1928, %v1928
    %v2098 = vmul.f32 %v2090, %v2090
    %v2099 = vmul.f32 %v2092, %v2092
    %v2100 = vmul.f32 %v1926, %v2096
    %v2101 = vmul.f32 %v1928, %v2097
    %v2102 = vmul.f32 %v2090, %v2098
    %v2103 = vmul.f32 %v2092, %v2099
    %v2104 = vmul.f32 %v2100, 0.044715
    %v2105 = vmul.f32 %v2101, 0.044715
    %v2106 = vmul.f32 %v2102, 0.044715
    %v2107 = vmul.f32 %v2103, 0.044715
    %v2108 = vadd.f32 %v1926, %v2104
    %v2109 = vadd.f32 %v1928, %v2105
    %v2110 = vadd.f32 %v2090, %v2106
    %v2111 = vadd.f32 %v2092, %v2107
    %v2112 = vmul.f32 %v2108, 0.7978846
    %v2113 = vmul.f32 %v2109, 0.7978846
    %v2114 = vmul.f32 %v2110, 0.7978846
    %v2115 = vmul.f32 %v2111, 0.7978846
    %v2116 = vtanh.pop %v2112
    %v2117 = vtanh.pop %v2113
    %v2118 = vtanh.pop %v2114
    %v2119 = vtanh.pop %v2115
    %v2120 = vadd.f32 %v2116, 1.0
    %v2121 = vadd.f32 %v2117, 1.0
    %v2122 = vadd.f32 %v2118, 1.0
    %v2123 = vadd.f32 %v2119, 1.0
    %v2124 = vmul.f32 %v2120, 0.5
    %v2125 = vmul.f32 %v2121, 0.5
    %v2126 = vmul.f32 %v2122, 0.5
    %v2127 = vmul.f32 %v2123, 0.5
    %v2128 = vmul.f32 %v1926, %v2124
    %v2129 = vmul.f32 %v1928, %v2125
    %v2130 = vmul.f32 %v2090, %v2126
    %v2131 = vmul.f32 %v2092, %v2127
    %v2132 = vpack.c.bf16 %v2128, %v2128
    %v2133 = vpack.c.bf16 %v2129, %v2129
    %v2134 = vpack.c.bf16 %v2130, %v2130
    %v2135 = vpack.c.bf16 %v2131, %v2131
    %v2264 = vunpack.c.l.b16 %v332
    %v2265 = vunpack.c.h.b16 %v332
    %v2266 = vunpack.c.l.b16 %v333
    %v2267 = vunpack.c.h.b16 %v333
    %v2268 = vunpack.c.l.b16 %v334
    %v2269 = vunpack.c.h.b16 %v334
    %v2270 = vunpack.c.l.b16 %v335
    %v2271 = vunpack.c.h.b16 %v335
    %v2272 = vunpack.c.l.b16 %v336
    %v2273 = vunpack.c.h.b16 %v336
    %v2274 = vunpack.c.l.b16 %v337
    %v2275 = vunpack.c.h.b16 %v337
    %v2276 = vunpack.c.l.b16 %v338
    %v2277 = vunpack.c.h.b16 %v338
    %v2278 = vunpack.c.l.b16 %v339
    %v2279 = vunpack.c.h.b16 %v339
    %v2280 = vunpack.c.l.b16 %v340
    %v2281 = vunpack.c.h.b16 %v340
    %v2282 = vunpack.c.l.b16 %v341
    %v2283 = vunpack.c.h.b16 %v341
    %v2284 = vunpack.c.l.b16 %v342
    %v2285 = vunpack.c.h.b16 %v342
    %v2286 = vunpack.c.l.b16 %v343
    %v2287 = vunpack.c.h.b16 %v343
    %v2288 = vunpack.c.l.b16 %v344
    %v2289 = vunpack.c.h.b16 %v344
    %v2290 = vunpack.c.l.b16 %v345
    %v2291 = vunpack.c.h.b16 %v345
    %v2292 = vunpack.c.l.b16 %v346
    %v2293 = vunpack.c.h.b16 %v346
    %v2294 = vunpack.c.l.b16 %v347
    %v2295 = vunpack.c.h.b16 %v347
    %v2296 = vunpack.c.l.b16 %v348
    %v2297 = vunpack.c.h.b16 %v348
    %v2298 = vunpack.c.l.b16 %v349
    %v2299 = vunpack.c.h.b16 %v349
    %v2300 = vunpack.c.l.b16 %v350
    %v2301 = vunpack.c.h.b16 %v350
    %v2302 = vunpack.c.l.b16 %v351
    %v2303 = vunpack.c.h.b16 %v351
    %v2304 = vunpack.c.l.b16 %v352
    %v2305 = vunpack.c.h.b16 %v352
    %v2306 = vunpack.c.l.b16 %v353
    %v2307 = vunpack.c.h.b16 %v353
    %v2308 = vunpack.c.l.b16 %v354
    %v2309 = vunpack.c.h.b16 %v354
    %v2310 = vunpack.c.l.b16 %v355
    %v2311 = vunpack.c.h.b16 %v355
    %v2312 = vunpack.c.l.b16 %v356
    %v2313 = vunpack.c.h.b16 %v356
    %v2314 = vunpack.c.l.b16 %v357
    %v2315 = vunpack.c.h.b16 %v357
    %v2316 = vunpack.c.l.b16 %v358
    %v2317 = vunpack.c.h.b16 %v358
    %v2318 = vunpack.c.l.b16 %v359
    %v2319 = vunpack.c.h.b16 %v359
    %v2320 = vunpack.c.l.b16 %v360
    %v2321 = vunpack.c.h.b16 %v360
    %v2322 = vunpack.c.l.b16 %v361
    %v2323 = vunpack.c.h.b16 %v361
    %v2324 = vunpack.c.l.b16 %v362
    %v2325 = vunpack.c.h.b16 %v362
    %v2326 = vunpack.c.l.b16 %v363
    %v2327 = vunpack.c.h.b16 %v363
    %v2328 = vunpack.c.l.b16 %v364
    %v2329 = vunpack.c.h.b16 %v364
    %v2330 = vunpack.c.l.b16 %v365
    %v2331 = vunpack.c.h.b16 %v365
    %v2332 = vunpack.c.l.b16 %v366
    %v2333 = vunpack.c.h.b16 %v366
    %v2334 = vunpack.c.l.b16 %v367
    %v2335 = vunpack.c.h.b16 %v367
    %v2336 = vunpack.c.l.b16 %v368
    %v2337 = vunpack.c.h.b16 %v368
    %v2338 = vunpack.c.l.b16 %v369
    %v2339 = vunpack.c.h.b16 %v369
    %v2340 = vunpack.c.l.b16 %v370
    %v2341 = vunpack.c.h.b16 %v370
    %v2342 = vunpack.c.l.b16 %v371
    %v2343 = vunpack.c.h.b16 %v371
    %v2344 = vunpack.c.l.b16 %v372
    %v2345 = vunpack.c.h.b16 %v372
    %v2346 = vunpack.c.l.b16 %v373
    %v2347 = vunpack.c.h.b16 %v373
    %v2348 = vunpack.c.l.b16 %v374
    %v2349 = vunpack.c.h.b16 %v374
    %v2350 = vunpack.c.l.b16 %v375
    %v2351 = vunpack.c.h.b16 %v375
    %v2352 = vunpack.c.l.b16 %v376
    %v2353 = vunpack.c.h.b16 %v376
    %v2354 = vunpack.c.l.b16 %v377
    %v2355 = vunpack.c.h.b16 %v377
    %v2356 = vunpack.c.l.b16 %v378
    %v2357 = vunpack.c.h.b16 %v378
    %v2358 = vunpack.c.l.b16 %v379
    %v2359 = vunpack.c.h.b16 %v379
    %v2360 = vunpack.c.l.b16 %v380
    %v2361 = vunpack.c.h.b16 %v380
    %v2362 = vunpack.c.l.b16 %v381
    %v2363 = vunpack.c.h.b16 %v381
    %v2364 = vunpack.c.l.b16 %v382
    %v2365 = vunpack.c.h.b16 %v382
    %v2366 = vunpack.c.l.b16 %v383
    %v2367 = vunpack.c.h.b16 %v383
    %v2368 = vunpack.c.l.b16 %v384
    %v2369 = vunpack.c.h.b16 %v384
    %v2370 = vunpack.c.l.b16 %v385
    %v2371 = vunpack.c.h.b16 %v385
    %v2372 = vunpack.c.l.b16 %v386
    %v2373 = vunpack.c.h.b16 %v386
    %v2374 = vunpack.c.l.b16 %v387
    %v2375 = vunpack.c.h.b16 %v387
    %v2376 = vunpack.c.l.b16 %v388
    %v2377 = vunpack.c.h.b16 %v388
    %v2378 = vunpack.c.l.b16 %v389
    %v2379 = vunpack.c.h.b16 %v389
    %v2380 = vunpack.c.l.b16 %v390
    %v2381 = vunpack.c.h.b16 %v390
    %v2382 = vunpack.c.l.b16 %v391
    %v2383 = vunpack.c.h.b16 %v391
    %v2384 = vunpack.c.l.b16 %v392
    %v2385 = vunpack.c.h.b16 %v392
    %v2386 = vunpack.c.l.b16 %v393
    %v2387 = vunpack.c.h.b16 %v393
    %v2388 = vunpack.c.l.b16 %v394
    %v2389 = vunpack.c.h.b16 %v394
    %v2390 = vunpack.c.l.b16 %v395
    %v2391 = vunpack.c.h.b16 %v395
    %v2392 = vunpack.c.l.b16 %v396
    %v2393 = vunpack.c.h.b16 %v396
    %v2394 = vunpack.c.l.b16 %v397
    %v2395 = vunpack.c.h.b16 %v397
    %v2396 = vunpack.c.l.b16 %v398
    %v2397 = vunpack.c.h.b16 %v398
    %v2398 = vunpack.c.l.b16 %v399
    %v2399 = vunpack.c.h.b16 %v399
    %v2400 = vunpack.c.l.b16 %v400
    %v2401 = vunpack.c.h.b16 %v400
    %v2402 = vunpack.c.l.b16 %v401
    %v2403 = vunpack.c.h.b16 %v401
    %v2404 = vunpack.c.l.b16 %v402
    %v2405 = vunpack.c.h.b16 %v402
    %v2406 = vunpack.c.l.b16 %v403
    %v2407 = vunpack.c.h.b16 %v403
    %v2408 = vunpack.c.l.b16 %v404
    %v2409 = vunpack.c.h.b16 %v404
    %v2410 = vunpack.c.l.b16 %v405
    %v2411 = vunpack.c.h.b16 %v405
    %v2412 = vunpack.c.l.b16 %v406
    %v2413 = vunpack.c.h.b16 %v406
    %v2414 = vunpack.c.l.b16 %v407
    %v2415 = vunpack.c.h.b16 %v407
    %v2416 = vunpack.c.l.b16 %v408
    %v2417 = vunpack.c.h.b16 %v408
    %v2418 = vunpack.c.l.b16 %v409
    %v2419 = vunpack.c.h.b16 %v409
    %v2420 = vunpack.c.l.b16 %v410
    %v2421 = vunpack.c.h.b16 %v410
    %v2422 = vunpack.c.l.b16 %v411
    %v2423 = vunpack.c.h.b16 %v411
    %v2424 = vunpack.c.l.b16 %v412
    %v2425 = vunpack.c.h.b16 %v412
    %v2426 = vunpack.c.l.b16 %v413
    %v2427 = vunpack.c.h.b16 %v413
    %v2428 = vunpack.c.l.b16 %v414
    %v2429 = vunpack.c.h.b16 %v414
    %v2430 = vunpack.c.l.b16 %v415
    %v2431 = vunpack.c.h.b16 %v415
    %v2432 = vunpack.c.l.b16 %v416
    %v2433 = vunpack.c.h.b16 %v416
    %v2434 = vunpack.c.l.b16 %v417
    %v2435 = vunpack.c.h.b16 %v417
    %v2436 = vunpack.c.l.b16 %v418
    %v2437 = vunpack.c.h.b16 %v418
    %v2438 = vunpack.c.l.b16 %v419
    %v2439 = vunpack.c.h.b16 %v419
    %v2440 = vunpack.c.l.b16 %v420
    %v2441 = vunpack.c.h.b16 %v420
    %v2442 = vunpack.c.l.b16 %v421
    %v2443 = vunpack.c.h.b16 %v421
    %v2444 = vunpack.c.l.b16 %v422
    %v2445 = vunpack.c.h.b16 %v422
    %v2446 = vunpack.c.l.b16 %v423
    %v2447 = vunpack.c.h.b16 %v423
    %v2448 = vunpack.c.l.b16 %v424
    %v2449 = vunpack.c.h.b16 %v424
    %v2450 = vunpack.c.l.b16 %v425
    %v2451 = vunpack.c.h.b16 %v425
    %v2452 = vunpack.c.l.b16 %v426
    %v2453 = vunpack.c.h.b16 %v426
    %v2454 = vunpack.c.l.b16 %v427
    %v2455 = vunpack.c.h.b16 %v427
    %v2456 = vunpack.c.l.b16 %v428
    %v2457 = vunpack.c.h.b16 %v428
    %v2458 = vunpack.c.l.b16 %v429
    %v2459 = vunpack.c.h.b16 %v429
    %v2460 = vunpack.c.l.b16 %v430
    %v2461 = vunpack.c.h.b16 %v430
    %v2462 = vunpack.c.l.b16 %v431
    %v2463 = vunpack.c.h.b16 %v431
    %v2464 = vunpack.c.l.b16 %v432
    %v2465 = vunpack.c.h.b16 %v432
    %v2466 = vunpack.c.l.b16 %v433
    %v2467 = vunpack.c.h.b16 %v433
    %v2468 = vunpack.c.l.b16 %v434
    %v2469 = vunpack.c.h.b16 %v434
    %v2470 = vunpack.c.l.b16 %v435
    %v2471 = vunpack.c.h.b16 %v435
    %v2472 = vunpack.c.l.b16 %v436
    %v2473 = vunpack.c.h.b16 %v436
    %v2474 = vunpack.c.l.b16 %v437
    %v2475 = vunpack.c.h.b16 %v437
    %v2476 = vunpack.c.l.b16 %v438
    %v2477 = vunpack.c.h.b16 %v438
    %v2478 = vunpack.c.l.b16 %v439
    %v2479 = vunpack.c.h.b16 %v439
    %v2480 = vunpack.c.l.b16 %v440
    %v2481 = vunpack.c.h.b16 %v440
    %v2482 = vunpack.c.l.b16 %v441
    %v2483 = vunpack.c.h.b16 %v441
    %v2484 = vunpack.c.l.b16 %v442
    %v2485 = vunpack.c.h.b16 %v442
    %v2486 = vunpack.c.l.b16 %v443
    %v2487 = vunpack.c.h.b16 %v443
    %v2488 = vunpack.c.l.b16 %v444
    %v2489 = vunpack.c.h.b16 %v444
    %v2490 = vunpack.c.l.b16 %v445
    %v2491 = vunpack.c.h.b16 %v445
    %v2492 = vunpack.c.l.b16 %v446
    %v2493 = vunpack.c.h.b16 %v446
    %v2494 = vunpack.c.l.b16 %v447
    %v2495 = vunpack.c.h.b16 %v447
    %v2496 = vunpack.c.l.b16 %v448
    %v2497 = vunpack.c.h.b16 %v448
    %v2498 = vunpack.c.l.b16 %v449
    %v2499 = vunpack.c.h.b16 %v449
    %v2500 = vunpack.c.l.b16 %v450
    %v2501 = vunpack.c.h.b16 %v450
    %v2502 = vunpack.c.l.b16 %v451
    %v2503 = vunpack.c.h.b16 %v451
    %v2504 = vunpack.c.l.b16 %v452
    %v2505 = vunpack.c.h.b16 %v452
    %v2506 = vunpack.c.l.b16 %v453
    %v2507 = vunpack.c.h.b16 %v453
    %v2508 = vunpack.c.l.b16 %v454
    %v2509 = vunpack.c.h.b16 %v454
    %v2510 = vunpack.c.l.b16 %v455
    %v2511 = vunpack.c.h.b16 %v455
    %v2512 = vunpack.c.l.b16 %v456
    %v2513 = vunpack.c.h.b16 %v456
    %v2514 = vunpack.c.l.b16 %v457
    %v2515 = vunpack.c.h.b16 %v457
    %v2516 = vunpack.c.l.b16 %v458
    %v2517 = vunpack.c.h.b16 %v458
    %v2518 = vunpack.c.l.b16 %v459
    %v2519 = vunpack.c.h.b16 %v459
    %v2520 = vpack.c.b16 %v2268, %v2264
    %v2521 = vpack.c.b16 %v2269, %v2265
    %v2522 = vpack.c.b16 %v2270, %v2266
    %v2523 = vpack.c.b16 %v2271, %v2267
    %v2524 = vpack.c.b16 %v2276, %v2272
    %v2525 = vpack.c.b16 %v2277, %v2273
    %v2526 = vpack.c.b16 %v2278, %v2274
    %v2527 = vpack.c.b16 %v2279, %v2275
    %v2528 = vpack.c.b16 %v2284, %v2280
    %v2529 = vpack.c.b16 %v2285, %v2281
    %v2530 = vpack.c.b16 %v2286, %v2282
    %v2531 = vpack.c.b16 %v2287, %v2283
    %v2532 = vpack.c.b16 %v2292, %v2288
    %v2533 = vpack.c.b16 %v2293, %v2289
    %v2534 = vpack.c.b16 %v2294, %v2290
    %v2535 = vpack.c.b16 %v2295, %v2291
    %v2536 = vpack.c.b16 %v2300, %v2296
    %v2537 = vpack.c.b16 %v2301, %v2297
    %v2538 = vpack.c.b16 %v2302, %v2298
    %v2539 = vpack.c.b16 %v2303, %v2299
    %v2540 = vpack.c.b16 %v2308, %v2304
    %v2541 = vpack.c.b16 %v2309, %v2305
    %v2542 = vpack.c.b16 %v2310, %v2306
    %v2543 = vpack.c.b16 %v2311, %v2307
    %v2544 = vpack.c.b16 %v2316, %v2312
    %v2545 = vpack.c.b16 %v2317, %v2313
    %v2546 = vpack.c.b16 %v2318, %v2314
    %v2547 = vpack.c.b16 %v2319, %v2315
    %v2548 = vpack.c.b16 %v2324, %v2320
    %v2549 = vpack.c.b16 %v2325, %v2321
    %v2550 = vpack.c.b16 %v2326, %v2322
    %v2551 = vpack.c.b16 %v2327, %v2323
    %v2552 = vpack.c.b16 %v2332, %v2328
    %v2553 = vpack.c.b16 %v2333, %v2329
    %v2554 = vpack.c.b16 %v2334, %v2330
    %v2555 = vpack.c.b16 %v2335, %v2331
    %v2556 = vpack.c.b16 %v2340, %v2336
    %v2557 = vpack.c.b16 %v2341, %v2337
    %v2558 = vpack.c.b16 %v2342, %v2338
    %v2559 = vpack.c.b16 %v2343, %v2339
    %v2560 = vpack.c.b16 %v2348, %v2344
    %v2561 = vpack.c.b16 %v2349, %v2345
    %v2562 = vpack.c.b16 %v2350, %v2346
    %v2563 = vpack.c.b16 %v2351, %v2347
    %v2564 = vpack.c.b16 %v2356, %v2352
    %v2565 = vpack.c.b16 %v2357, %v2353
    %v2566 = vpack.c.b16 %v2358, %v2354
    %v2567 = vpack.c.b16 %v2359, %v2355
    %v2568 = vpack.c.b16 %v2364, %v2360
    %v2569 = vpack.c.b16 %v2365, %v2361
    %v2570 = vpack.c.b16 %v2366, %v2362
    %v2571 = vpack.c.b16 %v2367, %v2363
    %v2572 = vpack.c.b16 %v2372, %v2368
    %v2573 = vpack.c.b16 %v2373, %v2369
    %v2574 = vpack.c.b16 %v2374, %v2370
    %v2575 = vpack.c.b16 %v2375, %v2371
    %v2576 = vpack.c.b16 %v2380, %v2376
    %v2577 = vpack.c.b16 %v2381, %v2377
    %v2578 = vpack.c.b16 %v2382, %v2378
    %v2579 = vpack.c.b16 %v2383, %v2379
    %v2580 = vpack.c.b16 %v2388, %v2384
    %v2581 = vpack.c.b16 %v2389, %v2385
    %v2582 = vpack.c.b16 %v2390, %v2386
    %v2583 = vpack.c.b16 %v2391, %v2387
    %v2584 = vpack.c.b16 %v2396, %v2392
    %v2585 = vpack.c.b16 %v2397, %v2393
    %v2586 = vpack.c.b16 %v2398, %v2394
    %v2587 = vpack.c.b16 %v2399, %v2395
    %v2588 = vpack.c.b16 %v2404, %v2400
    %v2589 = vpack.c.b16 %v2405, %v2401
    %v2590 = vpack.c.b16 %v2406, %v2402
    %v2591 = vpack.c.b16 %v2407, %v2403
    %v2592 = vpack.c.b16 %v2412, %v2408
    %v2593 = vpack.c.b16 %v2413, %v2409
    %v2594 = vpack.c.b16 %v2414, %v2410
    %v2595 = vpack.c.b16 %v2415, %v2411
    %v2596 = vpack.c.b16 %v2420, %v2416
    %v2597 = vpack.c.b16 %v2421, %v2417
    %v2598 = vpack.c.b16 %v2422, %v2418
    %v2599 = vpack.c.b16 %v2423, %v2419
    %v2600 = vpack.c.b16 %v2428, %v2424
    %v2601 = vpack.c.b16 %v2429, %v2425
    %v2602 = vpack.c.b16 %v2430, %v2426
    %v2603 = vpack.c.b16 %v2431, %v2427
    %v2604 = vpack.c.b16 %v2436, %v2432
    %v2605 = vpack.c.b16 %v2437, %v2433
    %v2606 = vpack.c.b16 %v2438, %v2434
    %v2607 = vpack.c.b16 %v2439, %v2435
    %v2608 = vpack.c.b16 %v2444, %v2440
    %v2609 = vpack.c.b16 %v2445, %v2441
    %v2610 = vpack.c.b16 %v2446, %v2442
    %v2611 = vpack.c.b16 %v2447, %v2443
    %v2612 = vpack.c.b16 %v2452, %v2448
    %v2613 = vpack.c.b16 %v2453, %v2449
    %v2614 = vpack.c.b16 %v2454, %v2450
    %v2615 = vpack.c.b16 %v2455, %v2451
    %v2616 = vpack.c.b16 %v2460, %v2456
    %v2617 = vpack.c.b16 %v2461, %v2457
    %v2618 = vpack.c.b16 %v2462, %v2458
    %v2619 = vpack.c.b16 %v2463, %v2459
    %v2620 = vpack.c.b16 %v2468, %v2464
    %v2621 = vpack.c.b16 %v2469, %v2465
    %v2622 = vpack.c.b16 %v2470, %v2466
    %v2623 = vpack.c.b16 %v2471, %v2467
    %v2624 = vpack.c.b16 %v2476, %v2472
    %v2625 = vpack.c.b16 %v2477, %v2473
    %v2626 = vpack.c.b16 %v2478, %v2474
    %v2627 = vpack.c.b16 %v2479, %v2475
    %v2628 = vpack.c.b16 %v2484, %v2480
    %v2629 = vpack.c.b16 %v2485, %v2481
    %v2630 = vpack.c.b16 %v2486, %v2482
    %v2631 = vpack.c.b16 %v2487, %v2483
    %v2632 = vpack.c.b16 %v2492, %v2488
    %v2633 = vpack.c.b16 %v2493, %v2489
    %v2634 = vpack.c.b16 %v2494, %v2490
    %v2635 = vpack.c.b16 %v2495, %v2491
    %v2636 = vpack.c.b16 %v2500, %v2496
    %v2637 = vpack.c.b16 %v2501, %v2497
    %v2638 = vpack.c.b16 %v2502, %v2498
    %v2639 = vpack.c.b16 %v2503, %v2499
    %v2640 = vpack.c.b16 %v2508, %v2504
    %v2641 = vpack.c.b16 %v2509, %v2505
    %v2642 = vpack.c.b16 %v2510, %v2506
    %v2643 = vpack.c.b16 %v2511, %v2507
    %v2644 = vpack.c.b16 %v2516, %v2512
    %v2645 = vpack.c.b16 %v2517, %v2513
    %v2646 = vpack.c.b16 %v2518, %v2514
    %v2647 = vpack.c.b16 %v2519, %v2515
    %2776 = vmatprep.subr.bf16.mxu0 %v2549
    %2777 = vmatpush1.bf16.msra.mxu0 %v2548
    %2778 = vmatprep.subr.bf16.mxu0 %v2545
    %2779 = vmatpush1.bf16.msra.mxu0 %v2544
    %2780 = vmatprep.subr.bf16.mxu0 %v2541
    %2781 = vmatpush1.bf16.msra.mxu0 %v2540
    %2782 = vmatprep.subr.bf16.mxu0 %v2537
    %2783 = vmatpush1.bf16.msra.mxu0 %v2536
    %2784 = vmatprep.subr.bf16.mxu0 %v2533
    %2785 = vmatpush1.bf16.msra.mxu0 %v2532
    %2786 = vmatprep.subr.bf16.mxu0 %v2529
    %2787 = vmatpush1.bf16.msra.mxu0 %v2528
    %2788 = vmatprep.subr.bf16.mxu0 %v2525
    %2789 = vmatpush1.bf16.msra.mxu0 %v2524
    %2790 = vmatprep.subr.bf16.mxu0 %v2521
    %2791 = vmatpush1.bf16.msra.mxu0 %v2520
    %2792 = vmatprep.subr.bf16.mxu0 %v2581
    %2793 = vmatpush2.bf16.msra.mxu0 %v2580
    %2794 = vmatprep.subr.bf16.mxu0 %v2577
    %2795 = vmatpush2.bf16.msra.mxu0 %v2576
    %2796 = vmatprep.subr.bf16.mxu0 %v2573
    %2797 = vmatpush2.bf16.msra.mxu0 %v2572
    %2798 = vmatprep.subr.bf16.mxu0 %v2569
    %2799 = vmatpush2.bf16.msra.mxu0 %v2568
    %2800 = vmatprep.subr.bf16.mxu0 %v2565
    %2801 = vmatpush2.bf16.msra.mxu0 %v2564
    %2802 = vmatprep.subr.bf16.mxu0 %v2561
    %2803 = vmatpush2.bf16.msra.mxu0 %v2560
    %2804 = vmatprep.subr.bf16.mxu0 %v2557
    %2805 = vmatpush2.bf16.msra.mxu0 %v2556
    %2806 = vmatprep.subr.bf16.mxu0 %v2553
    %2807 = vmatpush2.bf16.msra.mxu0 %v2552
    %2808 = vmatprep.mubr.bf16.mxu0 %v2133
    %2809 = vmatmul.mubr.bf16.gmra.mxu0 %v2132
    %v2810 = vpop.f32.mrf.mxu0
    %v2811 = vadd.f32 0.0, %v2810
    %v2812 = vpop.f32.mrf.mxu0
    %v2813 = vadd.f32 0.0, %v2812
    %v2814 = vpop.f32.mrf.mxu0
    %v2815 = vpop.f32.mrf.mxu0
    %2816 = vdwg.mxu0
    %2817 = vmatprep.subr.bf16.mxu0 %v2613
    %2818 = vmatpush1.bf16.msra.mxu0 %v2612
    %2819 = vmatprep.subr.bf16.mxu0 %v2609
    %2820 = vmatpush1.bf16.msra.mxu0 %v2608
    %2821 = vmatprep.subr.bf16.mxu0 %v2605
    %2822 = vmatpush1.bf16.msra.mxu0 %v2604
    %2823 = vmatprep.subr.bf16.mxu0 %v2601
    %2824 = vmatpush1.bf16.msra.mxu0 %v2600
    %2825 = vmatprep.subr.bf16.mxu0 %v2597
    %2826 = vmatpush1.bf16.msra.mxu0 %v2596
    %2827 = vmatprep.subr.bf16.mxu0 %v2593
    %2828 = vmatpush1.bf16.msra.mxu0 %v2592
    %2829 = vmatprep.subr.bf16.mxu0 %v2589
    %2830 = vmatpush1.bf16.msra.mxu0 %v2588
    %2831 = vmatprep.subr.bf16.mxu0 %v2585
    %2832 = vmatpush1.bf16.msra.mxu0 %v2584
    %2833 = vmatprep.subr.bf16.mxu0 %v2645
    %2834 = vmatpush2.bf16.msra.mxu0 %v2644
    %2835 = vmatprep.subr.bf16.mxu0 %v2641
    %2836 = vmatpush2.bf16.msra.mxu0 %v2640
    %2837 = vmatprep.subr.bf16.mxu0 %v2637
    %2838 = vmatpush2.bf16.msra.mxu0 %v2636
    %2839 = vmatprep.subr.bf16.mxu0 %v2633
    %2840 = vmatpush2.bf16.msra.mxu0 %v2632
    %2841 = vmatprep.subr.bf16.mxu0 %v2629
    %2842 = vmatpush2.bf16.msra.mxu0 %v2628
    %2843 = vmatprep.subr.bf16.mxu0 %v2625
    %2844 = vmatpush2.bf16.msra.mxu0 %v2624
    %2845 = vmatprep.subr.bf16.mxu0 %v2621
    %2846 = vmatpush2.bf16.msra.mxu0 %v2620
    %2847 = vmatprep.subr.bf16.mxu0 %v2617
    %2848 = vmatpush2.bf16.msra.mxu0 %v2616
    %2849 = vmatprep.mubr.bf16.mxu0 %v2135
    %2850 = vmatmul.mubr.bf16.gmra.mxu0 %v2134
    %v2851 = vpop.f32.mrf.mxu0
    %v2852 = vadd.f32 %v2811, %v2851
    %v2853 = vpop.f32.mrf.mxu0
    %v2854 = vadd.f32 %v2813, %v2853
    %v2855 = vpop.f32.mrf.mxu0
    %v2856 = vpop.f32.mrf.mxu0
    %2857 = vdwg.mxu0
    %2858 = vmatprep.subr.bf16.mxu0 %v2551
    %2859 = vmatpush1.bf16.msra.mxu0 %v2550
    %2860 = vmatprep.subr.bf16.mxu0 %v2547
    %2861 = vmatpush1.bf16.msra.mxu0 %v2546
    %2862 = vmatprep.subr.bf16.mxu0 %v2543
    %2863 = vmatpush1.bf16.msra.mxu0 %v2542
    %2864 = vmatprep.subr.bf16.mxu0 %v2539
    %2865 = vmatpush1.bf16.msra.mxu0 %v2538
    %2866 = vmatprep.subr.bf16.mxu0 %v2535
    %2867 = vmatpush1.bf16.msra.mxu0 %v2534
    %2868 = vmatprep.subr.bf16.mxu0 %v2531
    %2869 = vmatpush1.bf16.msra.mxu0 %v2530
    %2870 = vmatprep.subr.bf16.mxu0 %v2527
    %2871 = vmatpush1.bf16.msra.mxu0 %v2526
    %2872 = vmatprep.subr.bf16.mxu0 %v2523
    %2873 = vmatpush1.bf16.msra.mxu0 %v2522
    %2874 = vmatprep.subr.bf16.mxu0 %v2583
    %2875 = vmatpush2.bf16.msra.mxu0 %v2582
    %2876 = vmatprep.subr.bf16.mxu0 %v2579
    %2877 = vmatpush2.bf16.msra.mxu0 %v2578
    %2878 = vmatprep.subr.bf16.mxu0 %v2575
    %2879 = vmatpush2.bf16.msra.mxu0 %v2574
    %2880 = vmatprep.subr.bf16.mxu0 %v2571
    %2881 = vmatpush2.bf16.msra.mxu0 %v2570
    %2882 = vmatprep.subr.bf16.mxu0 %v2567
    %2883 = vmatpush2.bf16.msra.mxu0 %v2566
    %2884 = vmatprep.subr.bf16.mxu0 %v2563
    %2885 = vmatpush2.bf16.msra.mxu0 %v2562
    %2886 = vmatprep.subr.bf16.mxu0 %v2559
    %2887 = vmatpush2.bf16.msra.mxu0 %v2558
    %2888 = vmatprep.subr.bf16.mxu0 %v2555
    %2889 = vmatpush2.bf16.msra.mxu0 %v2554
    %2890 = vmatprep.mubr.bf16.mxu0 %v2133
    %2891 = vmatmul.mubr.bf16.gmra.mxu0 %v2132
    %v2892 = vpop.f32.mrf.mxu0
    %v2893 = vadd.f32 0.0, %v2892
    %v2894 = vpop.f32.mrf.mxu0
    %v2895 = vadd.f32 0.0, %v2894
    %v2896 = vpop.f32.mrf.mxu0
    %v2897 = vpop.f32.mrf.mxu0
    %2898 = vdwg.mxu0
    %2899 = vmatprep.subr.bf16.mxu0 %v2615
    %2900 = vmatpush1.bf16.msra.mxu0 %v2614
    %2901 = vmatprep.subr.bf16.mxu0 %v2611
    %2902 = vmatpush1.bf16.msra.mxu0 %v2610
    %2903 = vmatprep.subr.bf16.mxu0 %v2607
    %2904 = vmatpush1.bf16.msra.mxu0 %v2606
    %2905 = vmatprep.subr.bf16.mxu0 %v2603
    %2906 = vmatpush1.bf16.msra.mxu0 %v2602
    %2907 = vmatprep.subr.bf16.mxu0 %v2599
    %2908 = vmatpush1.bf16.msra.mxu0 %v2598
    %2909 = vmatprep.subr.bf16.mxu0 %v2595
    %2910 = vmatpush1.bf16.msra.mxu0 %v2594
    %2911 = vmatprep.subr.bf16.mxu0 %v2591
    %2912 = vmatpush1.bf16.msra.mxu0 %v2590
    %2913 = vmatprep.subr.bf16.mxu0 %v2587
    %2914 = vmatpush1.bf16.msra.mxu0 %v2586
    %2915 = vmatprep.subr.bf16.mxu0 %v2647
    %2916 = vmatpush2.bf16.msra.mxu0 %v2646
    %2917 = vmatprep.subr.bf16.mxu0 %v2643
    %2918 = vmatpush2.bf16.msra.mxu0 %v2642
    %2919 = vmatprep.subr.bf16.mxu0 %v2639
    %2920 = vmatpush2.bf16.msra.mxu0 %v2638
    %2921 = vmatprep.subr.bf16.mxu0 %v2635
    %2922 = vmatpush2.bf16.msra.mxu0 %v2634
    %2923 = vmatprep.subr.bf16.mxu0 %v2631
    %2924 = vmatpush2.bf16.msra.mxu0 %v2630
    %2925 = vmatprep.subr.bf16.mxu0 %v2627
    %2926 = vmatpush2.bf16.msra.mxu0 %v2626
    %2927 = vmatprep.subr.bf16.mxu0 %v2623
    %2928 = vmatpush2.bf16.msra.mxu0 %v2622
    %2929 = vmatprep.subr.bf16.mxu0 %v2619
    %2930 = vmatpush2.bf16.msra.mxu0 %v2618
    %2931 = vmatprep.mubr.bf16.mxu0 %v2135
    %2932 = vmatmul.mubr.bf16.gmra.mxu0 %v2134
    %v2933 = vpop.f32.mrf.mxu0
    %v2934 = vadd.f32 %v2893, %v2933
    %v2935 = vpop.f32.mrf.mxu0
    %v2936 = vadd.f32 %v2895, %v2935
    %v2937 = vpop.f32.mrf.mxu0
    %v2938 = vpop.f32.mrf.mxu0
    %2939 = vdwg.mxu0
    %v2940 = vadd.f32 %v1926, %v2852
    %v2941 = vadd.f32 %v1928, %v2854
    %v2942 = vadd.f32 %v2090, %v2934
    %v2943 = vadd.f32 %v2092, %v2936
    %v2944 = vadd.f32 %v2940, %v2941
    %v2945 = vadd.f32 %v2944, %v2942
    %v2946 = vadd.f32 %v2945, %v2943
    %2947 = vadd.xlane.f32.xlu0 %v2946
    %v2948 = vpop.xlane.xlu0 %2947
    %v2949 = vrcp.pop 512.0
    %v2950 = vmul.f32 %v2948, %v2949
    %v2951 = vsub.f32 %v2940, %v2950
    %v2952 = vsub.f32 %v2941, %v2950
    %v2953 = vsub.f32 %v2942, %v2950
    %v2954 = vsub.f32 %v2943, %v2950
    %v2955 = vmul.f32 %v2951, %v2951
    %v2956 = vmul.f32 %v2952, %v2952
    %v2957 = vmul.f32 %v2953, %v2953
    %v2958 = vmul.f32 %v2954, %v2954
    %v2959 = vadd.f32 %v2955, %v2956
    %v2960 = vadd.f32 %v2959, %v2957
    %v2961 = vadd.f32 %v2960, %v2958
    %2962 = vadd.xlane.f32.xlu0 %v2961
    %v2963 = vpop.xlane.xlu0 %2962
    %v2964 = vmul.f32 %v2963, %v2949
    %v2965 = vadd.f32 %v2964, 1e-05
    %v2966 = vrsqrt.pop %v2965
    %v2967 = vmul.f32 %v2951, %v2966
    %v2968 = vmul.f32 %v2952, %v2966
    %v2969 = vmul.f32 %v2953, %v2966
    %v2970 = vmul.f32 %v2954, %v2966
    %v2971 = vld [vmem:[%s3] sm:$0xf]
    %v2973 = vlaneseq
    %v2974 = vshrl.u32 %v2973, 7
    %v2975 = vsub.s32 0, %v2974
    %v2976 = vrot.slane %v2971, %v2975
    %v2977 = vlaneseq
    %v2978 = vshrl.u32 %v2977, 7
    %v2979 = vsub.s32 1, %v2978
    %v2980 = vrot.slane %v2971, %v2979
    %v2981 = vlaneseq
    %v2982 = vshrl.u32 %v2981, 7
    %v2983 = vsub.s32 2, %v2982
    %v2984 = vrot.slane %v2971, %v2983
    %v2985 = vlaneseq
    %v2986 = vshrl.u32 %v2985, 7
    %v2987 = vsub.s32 3, %v2986
    %v2988 = vrot.slane %v2971, %v2987
    %v2993 = vmul.f32 %v2967, %v2976
    %v2994 = vmul.f32 %v2968, %v2980
    %v2995 = vmul.f32 %v2969, %v2984
    %v2996 = vmul.f32 %v2970, %v2988
    %v2997 = vld [vmem:[#allocation8] sm:$0xf]
    %v2999 = vlaneseq
    %v3000 = vshrl.u32 %v2999, 7
    %v3001 = vsub.s32 0, %v3000
    %v3002 = vrot.slane %v2997, %v3001
    %v3003 = vlaneseq
    %v3004 = vshrl.u32 %v3003, 7
    %v3005 = vsub.s32 1, %v3004
    %v3006 = vrot.slane %v2997, %v3005
    %v3007 = vlaneseq
    %v3008 = vshrl.u32 %v3007, 7
    %v3009 = vsub.s32 2, %v3008
    %v3010 = vrot.slane %v2997, %v3009
    %v3011 = vlaneseq
    %v3012 = vshrl.u32 %v3011, 7
    %v3013 = vsub.s32 3, %v3012
    %v3014 = vrot.slane %v2997, %v3013
    %v3019 = vadd.f32 %v2993, %v3002
    %v3020 = vadd.f32 %v2994, %v3006
    %v3021 = vadd.f32 %v2995, %v3010
    %v3022 = vadd.f32 %v2996, %v3014
    %v3023 = vmul.f32 %v3019, %v3019
    %v3024 = vmul.f32 %v3020, %v3020
    %v3025 = vmul.f32 %v3021, %v3021
    %v3026 = vmul.f32 %v3022, %v3022
    %v3027 = vadd.f32 %v3023, %v3024
    %v3028 = vadd.f32 %v3027, %v3025
    %v3029 = vadd.f32 %v3028, %v3026
    %3030 = vadd.xlane.f32.xlu0 %v3029
    %v3031 = vpop.xlane.xlu0 %3030
    %v3032 = vrsqrt.pop %v3031
    %v3033 = vmul.f32 %v3019, %v3032
    %v3034 = vmul.f32 %v3020, %v3032
    %v3035 = vmul.f32 %v3021, %v3032
    %v3036 = vmul.f32 %v3022, %v3032
    %3037 = vst [vmem:[#allocation10] sm:$0xff] %v3033
    %3038 = vst [vmem:[#allocation10 + $0x8] sm:$0xff] %v3034
    %3039 = vst [vmem:[#allocation10 + $0x10] sm:$0xff] %v3035
    %3040 = vst [vmem:[#allocation10 + $0x18] sm:$0xff] %v3036
    // Predicated region
    $region38: #{tpu_custom_call.1} parent=1 // pred_check
      _
    $region39: #{tpu_custom_call.1} parent=1 // pred_check_branch
      %3042 = sbr.rel (0) target = $region41
    $region40: #{tpu_custom_call.1} parent=1 // pred_region
      %s3044 = ssub.s32 512, 512
      %3045 = vsyncadd [#allocation4], %s3044
      %s3047 = sshll.u32 [#allocation10], 4
      %s3048 = int_to_ptr.vmem [resolvable:$true] %s3047
      %3050 = dma.vmem_to_hbm [thread:$0]  %s3048, 512, %s5, [#allocation4]
    $region41: #{tpu_custom_call.1} parent=1 // pred_fallthru
      _
    // Predicated region
    $region42: #{tpu_custom_call.1} parent=1 // pred_check
      _
    $region43: #{tpu_custom_call.1} parent=1 // pred_check_branch
      %3052 = sbr.rel (0) target = $region45
    $region44: #{tpu_custom_call.1} parent=1 // pred_region
      %3053 = dma.done [#allocation4], 512
    $region45: #{tpu_custom_call.1} parent=1 // pred_fallthru
      _
    %3054 = vsyncpa [#allocation3], 1
    %3055 = vsyncpa [#allocation6], 1
    %3056 = vsyncpa [#allocation9], 1
    %3057 = vsyncpa [#allocation4], 1

</llo_original>
